<compile_context>
chip_gen: v5e
topology: v5e:2x2
jax: 0.10.0
libtpu: 0.0.40
codegen_flags: <defaults>
</compile_context>

<pallas_src>
import math
from functools import partial

import jax
import jax.numpy as jnp
from jax.experimental import pallas as pl
from jax.experimental.pallas import tpu as pltpu


# ----------------------------- fused Pallas kernel ---------------------------


def _fused_embed_kernel(p_ref, w1_ref, b1_ref, w2_ref, b2_ref, wl_ref, bl_ref,
                        pe_ref, g_ref, beta_ref, o_ref, *,
                        Tpar, Wh, TQ, W2, odim, xscale, eps,
                        compute_dtype, lane_aligned):
    """One (batch, output-time-tile) step: conv1+conv2+Linear+pos-enc+LayerNorm.

    p_ref : (1, 1, 4*Tpar*Wh, 9)  conv1 im2col patches; rows ordered
            (parity-plane, parity-row, parity-col), 9 taps on the minor dim.
    w1_ref: (9, odim)             conv1 weight as a matmul
    w2_ref: (9, odim, odim)       conv2 weight, one (Cin, Cout) matrix per tap
    wl_ref: (W2*odim, odim)       output Linear, rows regrouped (freq, chan)
    pe_ref: (TQ, odim)            absolute sinusoidal pos-enc rows of this tile
    o_ref : (1, TQ, odim)
    """
    # ---- conv1: ONE fused MXU dot for all 4 (time,freq)-parity planes ------
    p = p_ref[0, 0]                                        # (4*Tpar*Wh, 9)
    y1 = jnp.dot(p, w1_ref[...], preferred_element_type=jnp.float32)
    y1 = jnp.maximum(y1 + b1_ref[...], 0.0).astype(compute_dtype)
    pw = Tpar * Wh
    planes = [y1[k * pw:(k + 1) * pw, :].reshape(Tpar, Wh, odim)
              for k in range(4)]                           # VMEM-resident, bf16

    # ---- conv2: 9 shifted matmuls, f32 accumulation, no im2col buffer ------
    acc2 = None
    for kt in range(3):
        for kd in range(3):
            pt, i0 = kt % 2, kt // 2
            pd, j0 = kd % 2, kd // 2
            patch = planes[2 * pt + pd][i0:i0 + TQ, j0:j0 + W2, :]
            patch = patch.reshape(TQ * W2, odim)
            d = jnp.dot(patch, w2_ref[kt * 3 + kd],
                        preferred_element_type=jnp.float32)
            acc2 = d if acc2 is None else acc2 + d
    y2 = jnp.maximum(acc2 + b2_ref[...], 0.0).astype(compute_dtype)
    y2 = y2.reshape(TQ, W2, odim)

    # ---- output Linear (NCHW flatten order folded into wl_ref's row layout) -
    if lane_aligned:
        # lane-dense concat -> ONE (TQ, W2*odim)@(W2*odim, odim) MXU dot
        y2w = jnp.concatenate([y2[:, f, :] for f in range(W2)], axis=-1)
        z = jnp.dot(y2w, wl_ref[...], preferred_element_type=jnp.float32)
    else:
        # odim not a multiple of 128 (toy shapes): per-freq-bin accumulation
        z = None
        for f in range(W2):
            d = jnp.dot(y2[:, f, :], wl_ref[f * odim:(f + 1) * odim, :],
                        preferred_element_type=jnp.float32)
            z = d if z is None else z + d
    z = z + bl_ref[...]

    # ---- abs positional encoding + LayerNorm (all f32) ---------------------
    y = z * xscale + pe_ref[...]
    mean = jnp.mean(y, axis=-1, keepdims=True)
    yc = y - mean                                          # cached centered val
    var = jnp.mean(yc * yc, axis=-1, keepdims=True)
    y = yc * jax.lax.rsqrt(var + eps)
    o_ref[0] = (y * g_ref[...] + beta_ref[...]).astype(o_ref.dtype)


# --------------------------------- wrapper -----------------------------------


def sinusoidal_pe(length, d_model):
    position = jnp.arange(length, dtype=jnp.float32)[:, None]
    div_term = jnp.exp(jnp.arange(0, d_model, 2, dtype=jnp.float32) *
                       -(math.log(10000.0) / d_model))
    pe = jnp.zeros((length, d_model), dtype=jnp.float32)
    pe = pe.at[:, 0::2].set(jnp.sin(position * div_term))
    pe = pe.at[:, 1::2].set(jnp.cos(position * div_term))
    return pe


def init_params(key, input_size, output_size):
    ks = jax.random.split(key, 6)
    odim = output_size
    f_dim = odim * (((input_size - 1) // 2 - 1) // 2)
    return {
        "w1": 0.1 * jax.random.normal(ks[0], (odim, 1, 3, 3), jnp.float32),
        "b1": 0.1 * jax.random.normal(ks[1], (odim,), jnp.float32),
        "w2": 0.1 * jax.random.normal(ks[2], (odim, odim, 3, 3), jnp.float32),
        "b2": 0.1 * jax.random.normal(ks[3], (odim,), jnp.float32),
        "w_lin": 0.1 * jax.random.normal(ks[4], (odim, f_dim), jnp.float32),
        "b_lin": 0.1 * jax.random.normal(ks[5], (odim,), jnp.float32),
        "gamma": jnp.ones((odim,), jnp.float32),
        "beta": jnp.zeros((odim,), jnp.float32),
    }


def base_encoder_forward(xs, xs_lens, params, output_size, norm_eps=1e-5,
                         compute_dtype=jnp.bfloat16, time_tile=None):
    """xs: (B,T,D) f32, xs_lens: (B,) int32 -> (out (B,T',odim), masks (B,1,T'))."""
    B, T, D = xs.shape
    odim = output_size
    H1, W1 = (T - 3) // 2 + 1, (D - 3) // 2 + 1           # after conv1 (k=3,s=2)
    H2, W2 = (H1 - 3) // 2 + 1, (W1 - 3) // 2 + 1         # after conv2
    Wh = W2 + 1                                           # parity-plane freq (+1 halo col)

    # padding masks + Conv2dSubsampling4 mask subsampling (tiny bool, XLA side)
    masks = (jnp.arange(T)[None, :] < xs_lens[:, None])[:, None, :]   # (B,1,T)
    sub_masks = masks[:, :, 2::2][:, :, 2::2]                         # (B,1,T')

    # ---- per-generation output-time tile / VMEM budget ---------------------
    try:
        vmem_cap = int(pltpu.get_tpu_info().vmem_capacity_bytes)
    except Exception:
        vmem_cap = 64 * 1024 * 1024                       # conservative (v7x)
    vmem_limit = max(min(vmem_cap - (8 << 20), 100 << 20), 16 << 20)
    if time_tile is None:
        # sized so planes(bf16) + conv1 f32 drain + patch double-buffer stay
        # well inside the per-core budget (v7x: 64 MiB, v5e/v6e: 128 MiB)
        time_tile = 256 if vmem_cap >= (96 << 20) else 128
    if H2 <= time_tile:
        TQ, NQ = H2, 1
    else:
        TQ = max(8, (time_tile // 8) * 8)                 # keep (8,128) tiling rule
        NQ = -(-H2 // TQ)
    H2p = NQ * TQ                                         # padded output rows
    Tpar = TQ + 1                                         # per-tile parity rows (+1 halo)
    Hp = H2p + 1                                          # global parity rows needed

    # ---- conv1 im2col patches grouped by (time,freq) parity of the conv1
    # output so every stride-2 conv2 tap is a contiguous slice in the kernel.
    # Zero padding here only feeds output rows/cols >= (H2, W2), which are
    # sliced off below, so pad garbage provably never reaches valid outputs.
    T_need = 4 * (Hp - 1) + 5
    D_need = 4 * (Wh - 1) + 5
    x = jnp.pad(xs, ((0, 0), (0, max(0, T_need - T)), (0, max(0, D_need - D))))
    plane_list = []
    for pt in range(2):
        for pd in range(2):
            taps = []
            for kt in range(3):
                for kd in range(3):
                    r0, c0 = 2 * pt + kt, 2 * pd + kd
                    taps.append(x[:, r0:r0 + 4 * (Hp - 1) + 1:4,
                                     c0:c0 + 4 * (Wh - 1) + 1:4])
            plane_list.append(jnp.stack(taps, axis=-1))    # (B, Hp, Wh, 9)
    p_all = jnp.stack(plane_list, axis=1)                  # (B, 4, Hp, Wh, 9)

    # time-tile with a 1-parity-row halo, duplicated host side so every grid
    # block is a plain disjoint Blocked block (no overlapping BlockSpecs).
    row_idx = (jnp.arange(NQ)[:, None] * TQ +
               jnp.arange(Tpar)[None, :]).reshape(-1)      # (NQ*Tpar,)
    p_t = jnp.take(p_all, row_idx, axis=2)                 # (B,4,NQ*Tpar,Wh,9)
    p_t = p_t.reshape(B, 4, NQ, Tpar, Wh, 9).transpose(0, 2, 1, 3, 4, 5)
    p_t = p_t.reshape(B, NQ, 4 * Tpar * Wh, 9).astype(compute_dtype)

    # ---- trace-time weight re-layouts: no device transposes in the kernel --
    w1_mat = params["w1"].reshape(odim, 9).T.astype(compute_dtype)          # (9, odim)
    w2_mat = params["w2"].transpose(2, 3, 1, 0).reshape(9, odim, odim)
    w2_mat = w2_mat.astype(compute_dtype)                                   # [tap](Ci,Co)
    wl_cat = params["w_lin"].reshape(odim, odim, W2).transpose(2, 1, 0)
    wl_cat = wl_cat.reshape(W2 * odim, odim).astype(compute_dtype)          # (W2*odim, odim)
    pe = sinusoidal_pe(H2p, odim)                                           # (H2p, odim) f32
    row = lambda v: v.reshape(1, odim).astype(jnp.float32)

    kernel = partial(_fused_embed_kernel, Tpar=Tpar, Wh=Wh, TQ=TQ, W2=W2,
                     odim=odim, xscale=float(math.sqrt(odim)), eps=norm_eps,
                     compute_dtype=compute_dtype,
                     lane_aligned=(odim % 128 == 0))

    out = pl.pallas_call(
        kernel,
        out_shape=jax.ShapeDtypeStruct((B, H2p, odim), jnp.float32),
        grid=(B, NQ),
        in_specs=[
            pl.BlockSpec((1, 1, 4 * Tpar * Wh, 9), lambda b, q: (b, q, 0, 0)),  # patches
            pl.BlockSpec((9, odim), lambda b, q: (0, 0)),                       # w1
            pl.BlockSpec((1, odim), lambda b, q: (0, 0)),                       # b1
            pl.BlockSpec((9, odim, odim), lambda b, q: (0, 0, 0)),              # w2
            pl.BlockSpec((1, odim), lambda b, q: (0, 0)),                       # b2
            pl.BlockSpec((W2 * odim, odim), lambda b, q: (0, 0)),               # w_lin
            pl.BlockSpec((1, odim), lambda b, q: (0, 0)),                       # b_lin
            pl.BlockSpec((TQ, odim), lambda b, q: (q, 0)),                      # pos-enc
            pl.BlockSpec((1, odim), lambda b, q: (0, 0)),                       # gamma
            pl.BlockSpec((1, odim), lambda b, q: (0, 0)),                       # beta
        ],
        out_specs=pl.BlockSpec((1, TQ, odim), lambda b, q: (b, q, 0)),
        compiler_params=pltpu.CompilerParams(
            dimension_semantics=("parallel", "parallel"),
            vmem_limit_bytes=int(vmem_limit),
        ),
    )(p_t, w1_mat, row(params["b1"]), w2_mat, row(params["b2"]),
      wl_cat, row(params["b_lin"]), pe, row(params["gamma"]), row(params["beta"]))

    # chunk_masks == sub_masks under the default config; encoder stacks are the
    # subclass's responsibility (identity here); after_norm is fused in-kernel.
    return out[:, :H2], sub_masks


# ------------------------------ XLA reference ---------------------------------


def reference_forward(xs, params, output_size, norm_eps=1e-5):
    odim = output_size
    x = xs[:, None, :, :]
    dn = ("NCHW", "OIHW", "NCHW")
    y = jax.lax.conv_general_dilated(x, params["w1"], (2, 2), "VALID",
                                     dimension_numbers=dn)
    y = jnp.maximum(y + params["b1"][None, :, None, None], 0.0)
    y = jax.lax.conv_general_dilated(y, params["w2"], (2, 2), "VALID",
                                     dimension_numbers=dn)
    y = jnp.maximum(y + params["b2"][None, :, None, None], 0.0)
    B, C, Tp, Dp = y.shape
    y = y.transpose(0, 2, 1, 3).reshape(B, Tp, C * Dp)
    y = y @ params["w_lin"].T + params["b_lin"]
    y = y * math.sqrt(odim) + sinusoidal_pe(Tp, odim)[None]
    mean = y.mean(-1, keepdims=True)
    var = ((y - mean) ** 2).mean(-1, keepdims=True)
    return (y - mean) / jnp.sqrt(var + norm_eps) * params["gamma"] + params["beta"]


# ---------------------------------- main ---------------------------------------


if __name__ == "__main__":
    B, T, INPUT_SIZE, OUTPUT_SIZE = 2, 16, 16, 32

    key = jax.random.PRNGKey(0)
    k_x, k_p, k_x2, k_p2 = jax.random.split(key, 4)
    xs = jax.random.normal(k_x, (B, T, INPUT_SIZE), jnp.float32)
    xs_lens = jnp.array([16, 11], dtype=jnp.int32)
    params = init_params(k_p, INPUT_SIZE, OUTPUT_SIZE)

    ref = reference_forward(xs, params, OUTPUT_SIZE)

    # f32 MXU operands: checked against the XLA reference (tolerance covers the
    # reference's own TPU default-precision matmuls/convs).
    out32, masks = base_encoder_forward(xs, xs_lens, params, OUTPUT_SIZE,
                                        compute_dtype=jnp.float32)
    out32 = jax.block_until_ready(out32)
    masks = jax.block_until_ready(masks)
    assert out32.shape == (B, 3, OUTPUT_SIZE), out32.shape
    assert masks.shape == (B, 1, 3) and masks.dtype == jnp.bool_, (masks.shape, masks.dtype)
    assert jnp.allclose(out32, ref, atol=3e-2, rtol=3e-2), float(jnp.abs(out32 - ref).max())
    # mask semantics: lens [16, 11] -> kept frames 6, 10, 14 after x4 subsample
    assert bool(jnp.all(masks[0])) and bool(masks[1, 0, 0]) and not bool(masks[1, 0, 2])

    # bf16 MXU operands (production default; f32 accumulation / LayerNorm): loose check
    out16, _ = base_encoder_forward(xs, xs_lens, params, OUTPUT_SIZE)
    out16 = jax.block_until_ready(out16)
    assert jnp.allclose(out16, ref, atol=1.5e-1, rtol=1.5e-1), float(jnp.abs(out16 - ref).max())

    # multi-tile path: time-tiled grid (NQ=3, TQ=16) with halo + output padding
    T2 = 140
    xs2 = jax.random.normal(k_x2, (B, T2, INPUT_SIZE), jnp.float32)
    xs2_lens = jnp.array([140, 100], dtype=jnp.int32)
    ref2 = reference_forward(xs2, params, OUTPUT_SIZE)
    out2, masks2 = base_encoder_forward(xs2, xs2_lens, params, OUTPUT_SIZE,
                                        compute_dtype=jnp.float32, time_tile=16)
    out2 = jax.block_until_ready(out2)
    assert out2.shape == ref2.shape and masks2.shape == (B, 1, ref2.shape[1])
    assert jnp.allclose(out2, ref2, atol=3e-2, rtol=3e-2), float(jnp.abs(out2 - ref2).max())

    # lane-aligned odim (production-style): exercises the single-dot output Linear
    OD3 = 128
    params3 = init_params(k_p2, INPUT_SIZE, OD3)
    ref3 = reference_forward(xs, params3, OD3)
    out3, _ = base_encoder_forward(xs, xs_lens, params3, OD3,
                                   compute_dtype=jnp.float32)
    out3 = jax.block_until_ready(out3)
    assert out3.shape == ref3.shape
    assert jnp.allclose(out3, ref3, atol=3e-2, rtol=3e-2), float(jnp.abs(out3 - ref3).max())

    print("KERNEL_OK")
</pallas_src>

<mosaic_0001>
module attributes {stable_mosaic.version = 11 : i64} {
  func.func @_fused_embed_kernel(%arg0: i32, %arg1: i32, %arg2: memref<1x1x64x9xf32, #tpu.memory_space<vmem>>, %arg3: memref<9x32xf32, #tpu.memory_space<vmem>>, %arg4: memref<1x32xf32, #tpu.memory_space<vmem>>, %arg5: memref<9x32x32xf32, #tpu.memory_space<vmem>>, %arg6: memref<1x32xf32, #tpu.memory_space<vmem>>, %arg7: memref<96x32xf32, #tpu.memory_space<vmem>>, %arg8: memref<1x32xf32, #tpu.memory_space<vmem>>, %arg9: memref<3x32xf32, #tpu.memory_space<vmem>>, %arg10: memref<1x32xf32, #tpu.memory_space<vmem>>, %arg11: memref<1x32xf32, #tpu.memory_space<vmem>>, %arg12: memref<1x3x32xf32, #tpu.memory_space<vmem>>) attributes {dimension_semantics = [#tpu.dimension_semantics<parallel>, #tpu.dimension_semantics<parallel>], iteration_bounds = array<i64: 2, 1>, scalar_prefetch = 0 : i64, scratch_operands = 0 : i64, tpu.core_type = #tpu.core_type<tc>, window_params = [{transform_indices = @transform_0, window_bounds = array<i64: 1, 1, 64, 9>}, {pipeline_mode = #tpu.pipeline_mode<synchronous>, transform_indices = @transform_1, window_bounds = array<i64: 9, 32>}, {pipeline_mode = #tpu.pipeline_mode<synchronous>, transform_indices = @transform_2, window_bounds = array<i64: 1, 32>}, {pipeline_mode = #tpu.pipeline_mode<synchronous>, transform_indices = @transform_3, window_bounds = array<i64: 9, 32, 32>}, {pipeline_mode = #tpu.pipeline_mode<synchronous>, transform_indices = @transform_4, window_bounds = array<i64: 1, 32>}, {pipeline_mode = #tpu.pipeline_mode<synchronous>, transform_indices = @transform_5, window_bounds = array<i64: 96, 32>}, {pipeline_mode = #tpu.pipeline_mode<synchronous>, transform_indices = @transform_6, window_bounds = array<i64: 1, 32>}, {transform_indices = @transform_7, window_bounds = array<i64: 3, 32>}, {pipeline_mode = #tpu.pipeline_mode<synchronous>, transform_indices = @transform_8, window_bounds = array<i64: 1, 32>}, {pipeline_mode = #tpu.pipeline_mode<synchronous>, transform_indices = @transform_9, window_bounds = array<i64: 1, 32>}, {transform_indices = @transform_10, window_bounds = array<i64: 1, 3, 32>}]} {
    %c0 = arith.constant 0 : index
    %c0_0 = arith.constant 0 : index
    %c0_1 = arith.constant 0 : index
    %c0_2 = arith.constant 0 : index
    %0 = vector.load %arg2[%c0, %c0_0, %c0_1, %c0_2] : memref<1x1x64x9xf32, #tpu.memory_space<vmem>>, vector<1x1x64x9xf32>
    %1 = vector.shape_cast %0 : vector<1x1x64x9xf32> to vector<64x9xf32>
    %c0_3 = arith.constant 0 : index
    %c0_4 = arith.constant 0 : index
    %2 = vector.load %arg3[%c0_3, %c0_4] : memref<9x32xf32, #tpu.memory_space<vmem>>, vector<9x32xf32>
    %cst = arith.constant dense<0.000000e+00> : vector<64x32xf32>
    %3 = tpu.matmul %1, %2, %cst {dimension_numbers = #tpu.dot_dimension_numbers<[1], [0], [0], [1], [0, 0, 1, 1], [], []>} : vector<64x9xf32>, vector<9x32xf32>, vector<64x32xf32> -> vector<64x32xf32>
    %c0_5 = arith.constant 0 : index
    %c0_6 = arith.constant 0 : index
    %4 = vector.load %arg4[%c0_5, %c0_6] : memref<1x32xf32, #tpu.memory_space<vmem>>, vector<1x32xf32>
    %5 = vector.broadcast %4 : vector<1x32xf32> to vector<64x32xf32>
    %6 = arith.addf %3, %5 : vector<64x32xf32>
    %cst_7 = arith.constant 0.000000e+00 : f32
    %7 = vector.broadcast %cst_7 : f32 to vector<64x32xf32>
    %8 = arith.maximumf %6, %7 : vector<64x32xf32>
    %9 = vector.extract_strided_slice %8 {offsets = [0, 0], sizes = [16, 32], strides = [1, 1]} : vector<64x32xf32> to vector<16x32xf32>
    %10 = vector.shape_cast %9 : vector<16x32xf32> to vector<4x4x32xf32>
    %11 = vector.extract_strided_slice %8 {offsets = [16, 0], sizes = [16, 32], strides = [1, 1]} : vector<64x32xf32> to vector<16x32xf32>
    %12 = vector.shape_cast %11 : vector<16x32xf32> to vector<4x4x32xf32>
    %13 = vector.extract_strided_slice %8 {offsets = [32, 0], sizes = [16, 32], strides = [1, 1]} : vector<64x32xf32> to vector<16x32xf32>
    %14 = vector.shape_cast %13 : vector<16x32xf32> to vector<4x4x32xf32>
    %15 = vector.extract_strided_slice %8 {offsets = [48, 0], sizes = [16, 32], strides = [1, 1]} : vector<64x32xf32> to vector<16x32xf32>
    %16 = vector.shape_cast %15 : vector<16x32xf32> to vector<4x4x32xf32>
    %17 = vector.extract_strided_slice %10 {offsets = [0, 0, 0], sizes = [3, 3, 32], strides = [1, 1, 1]} : vector<4x4x32xf32> to vector<3x3x32xf32>
    %18 = vector.shape_cast %17 : vector<3x3x32xf32> to vector<9x32xf32>
    %c0_8 = arith.constant 0 : index
    %c0_9 = arith.constant 0 : index
    %c0_10 = arith.constant 0 : index
    %19 = vector.load %arg5[%c0_8, %c0_9, %c0_10] : memref<9x32x32xf32, #tpu.memory_space<vmem>>, vector<1x32x32xf32>
    %20 = vector.shape_cast %19 : vector<1x32x32xf32> to vector<32x32xf32>
    %cst_11 = arith.constant dense<0.000000e+00> : vector<9x32xf32>
    %21 = tpu.matmul %18, %20, %cst_11 {dimension_numbers = #tpu.dot_dimension_numbers<[1], [0], [0], [1], [0, 0, 1, 1], [], []>} : vector<9x32xf32>, vector<32x32xf32>, vector<9x32xf32> -> vector<9x32xf32>
    %22 = vector.extract_strided_slice %12 {offsets = [0, 0, 0], sizes = [3, 3, 32], strides = [1, 1, 1]} : vector<4x4x32xf32> to vector<3x3x32xf32>
    %23 = vector.shape_cast %22 : vector<3x3x32xf32> to vector<9x32xf32>
    %c1 = arith.constant 1 : index
    %c0_12 = arith.constant 0 : index
    %c0_13 = arith.constant 0 : index
    %24 = vector.load %arg5[%c1, %c0_12, %c0_13] : memref<9x32x32xf32, #tpu.memory_space<vmem>>, vector<1x32x32xf32>
    %25 = vector.shape_cast %24 : vector<1x32x32xf32> to vector<32x32xf32>
    %cst_14 = arith.constant dense<0.000000e+00> : vector<9x32xf32>
    %26 = tpu.matmul %23, %25, %cst_14 {dimension_numbers = #tpu.dot_dimension_numbers<[1], [0], [0], [1], [0, 0, 1, 1], [], []>} : vector<9x32xf32>, vector<32x32xf32>, vector<9x32xf32> -> vector<9x32xf32>
    %27 = arith.addf %21, %26 : vector<9x32xf32>
    %28 = vector.extract_strided_slice %10 {offsets = [0, 1, 0], sizes = [3, 3, 32], strides = [1, 1, 1]} : vector<4x4x32xf32> to vector<3x3x32xf32>
    %29 = vector.shape_cast %28 : vector<3x3x32xf32> to vector<9x32xf32>
    %c2 = arith.constant 2 : index
    %c0_15 = arith.constant 0 : index
    %c0_16 = arith.constant 0 : index
    %30 = vector.load %arg5[%c2, %c0_15, %c0_16] : memref<9x32x32xf32, #tpu.memory_space<vmem>>, vector<1x32x32xf32>
    %31 = vector.shape_cast %30 : vector<1x32x32xf32> to vector<32x32xf32>
    %cst_17 = arith.constant dense<0.000000e+00> : vector<9x32xf32>
    %32 = tpu.matmul %29, %31, %cst_17 {dimension_numbers = #tpu.dot_dimension_numbers<[1], [0], [0], [1], [0, 0, 1, 1], [], []>} : vector<9x32xf32>, vector<32x32xf32>, vector<9x32xf32> -> vector<9x32xf32>
    %33 = arith.addf %27, %32 : vector<9x32xf32>
    %34 = vector.extract_strided_slice %14 {offsets = [0, 0, 0], sizes = [3, 3, 32], strides = [1, 1, 1]} : vector<4x4x32xf32> to vector<3x3x32xf32>
    %35 = vector.shape_cast %34 : vector<3x3x32xf32> to vector<9x32xf32>
    %c3 = arith.constant 3 : index
    %c0_18 = arith.constant 0 : index
    %c0_19 = arith.constant 0 : index
    %36 = vector.load %arg5[%c3, %c0_18, %c0_19] : memref<9x32x32xf32, #tpu.memory_space<vmem>>, vector<1x32x32xf32>
    %37 = vector.shape_cast %36 : vector<1x32x32xf32> to vector<32x32xf32>
    %cst_20 = arith.constant dense<0.000000e+00> : vector<9x32xf32>
    %38 = tpu.matmul %35, %37, %cst_20 {dimension_numbers = #tpu.dot_dimension_numbers<[1], [0], [0], [1], [0, 0, 1, 1], [], []>} : vector<9x32xf32>, vector<32x32xf32>, vector<9x32xf32> -> vector<9x32xf32>
    %39 = arith.addf %33, %38 : vector<9x32xf32>
    %40 = vector.extract_strided_slice %16 {offsets = [0, 0, 0], sizes = [3, 3, 32], strides = [1, 1, 1]} : vector<4x4x32xf32> to vector<3x3x32xf32>
    %41 = vector.shape_cast %40 : vector<3x3x32xf32> to vector<9x32xf32>
    %c4 = arith.constant 4 : index
    %c0_21 = arith.constant 0 : index
    %c0_22 = arith.constant 0 : index
    %42 = vector.load %arg5[%c4, %c0_21, %c0_22] : memref<9x32x32xf32, #tpu.memory_space<vmem>>, vector<1x32x32xf32>
    %43 = vector.shape_cast %42 : vector<1x32x32xf32> to vector<32x32xf32>
    %cst_23 = arith.constant dense<0.000000e+00> : vector<9x32xf32>
    %44 = tpu.matmul %41, %43, %cst_23 {dimension_numbers = #tpu.dot_dimension_numbers<[1], [0], [0], [1], [0, 0, 1, 1], [], []>} : vector<9x32xf32>, vector<32x32xf32>, vector<9x32xf32> -> vector<9x32xf32>
    %45 = arith.addf %39, %44 : vector<9x32xf32>
    %46 = vector.extract_strided_slice %14 {offsets = [0, 1, 0], sizes = [3, 3, 32], strides = [1, 1, 1]} : vector<4x4x32xf32> to vector<3x3x32xf32>
    %47 = vector.shape_cast %46 : vector<3x3x32xf32> to vector<9x32xf32>
    %c5 = arith.constant 5 : index
    %c0_24 = arith.constant 0 : index
    %c0_25 = arith.constant 0 : index
    %48 = vector.load %arg5[%c5, %c0_24, %c0_25] : memref<9x32x32xf32, #tpu.memory_space<vmem>>, vector<1x32x32xf32>
    %49 = vector.shape_cast %48 : vector<1x32x32xf32> to vector<32x32xf32>
    %cst_26 = arith.constant dense<0.000000e+00> : vector<9x32xf32>
    %50 = tpu.matmul %47, %49, %cst_26 {dimension_numbers = #tpu.dot_dimension_numbers<[1], [0], [0], [1], [0, 0, 1, 1], [], []>} : vector<9x32xf32>, vector<32x32xf32>, vector<9x32xf32> -> vector<9x32xf32>
    %51 = arith.addf %45, %50 : vector<9x32xf32>
    %52 = vector.extract_strided_slice %10 {offsets = [1, 0, 0], sizes = [3, 3, 32], strides = [1, 1, 1]} : vector<4x4x32xf32> to vector<3x3x32xf32>
    %53 = vector.shape_cast %52 : vector<3x3x32xf32> to vector<9x32xf32>
    %c6 = arith.constant 6 : index
    %c0_27 = arith.constant 0 : index
    %c0_28 = arith.constant 0 : index
    %54 = vector.load %arg5[%c6, %c0_27, %c0_28] : memref<9x32x32xf32, #tpu.memory_space<vmem>>, vector<1x32x32xf32>
    %55 = vector.shape_cast %54 : vector<1x32x32xf32> to vector<32x32xf32>
    %cst_29 = arith.constant dense<0.000000e+00> : vector<9x32xf32>
    %56 = tpu.matmul %53, %55, %cst_29 {dimension_numbers = #tpu.dot_dimension_numbers<[1], [0], [0], [1], [0, 0, 1, 1], [], []>} : vector<9x32xf32>, vector<32x32xf32>, vector<9x32xf32> -> vector<9x32xf32>
    %57 = arith.addf %51, %56 : vector<9x32xf32>
    %58 = vector.extract_strided_slice %12 {offsets = [1, 0, 0], sizes = [3, 3, 32], strides = [1, 1, 1]} : vector<4x4x32xf32> to vector<3x3x32xf32>
    %59 = vector.shape_cast %58 : vector<3x3x32xf32> to vector<9x32xf32>
    %c7 = arith.constant 7 : index
    %c0_30 = arith.constant 0 : index
    %c0_31 = arith.constant 0 : index
    %60 = vector.load %arg5[%c7, %c0_30, %c0_31] : memref<9x32x32xf32, #tpu.memory_space<vmem>>, vector<1x32x32xf32>
    %61 = vector.shape_cast %60 : vector<1x32x32xf32> to vector<32x32xf32>
    %cst_32 = arith.constant dense<0.000000e+00> : vector<9x32xf32>
    %62 = tpu.matmul %59, %61, %cst_32 {dimension_numbers = #tpu.dot_dimension_numbers<[1], [0], [0], [1], [0, 0, 1, 1], [], []>} : vector<9x32xf32>, vector<32x32xf32>, vector<9x32xf32> -> vector<9x32xf32>
    %63 = arith.addf %57, %62 : vector<9x32xf32>
    %64 = vector.extract_strided_slice %10 {offsets = [1, 1, 0], sizes = [3, 3, 32], strides = [1, 1, 1]} : vector<4x4x32xf32> to vector<3x3x32xf32>
    %65 = vector.shape_cast %64 : vector<3x3x32xf32> to vector<9x32xf32>
    %c8 = arith.constant 8 : index
    %c0_33 = arith.constant 0 : index
    %c0_34 = arith.constant 0 : index
    %66 = vector.load %arg5[%c8, %c0_33, %c0_34] : memref<9x32x32xf32, #tpu.memory_space<vmem>>, vector<1x32x32xf32>
    %67 = vector.shape_cast %66 : vector<1x32x32xf32> to vector<32x32xf32>
    %cst_35 = arith.constant dense<0.000000e+00> : vector<9x32xf32>
    %68 = tpu.matmul %65, %67, %cst_35 {dimension_numbers = #tpu.dot_dimension_numbers<[1], [0], [0], [1], [0, 0, 1, 1], [], []>} : vector<9x32xf32>, vector<32x32xf32>, vector<9x32xf32> -> vector<9x32xf32>
    %69 = arith.addf %63, %68 : vector<9x32xf32>
    %c0_36 = arith.constant 0 : index
    %c0_37 = arith.constant 0 : index
    %70 = vector.load %arg6[%c0_36, %c0_37] : memref<1x32xf32, #tpu.memory_space<vmem>>, vector<1x32xf32>
    %71 = vector.broadcast %70 : vector<1x32xf32> to vector<9x32xf32>
    %72 = arith.addf %69, %71 : vector<9x32xf32>
    %cst_38 = arith.constant 0.000000e+00 : f32
    %73 = vector.broadcast %cst_38 : f32 to vector<9x32xf32>
    %74 = arith.maximumf %72, %73 : vector<9x32xf32>
    %75 = vector.shape_cast %74 : vector<9x32xf32> to vector<3x3x32xf32>
    %76 = vector.extract_strided_slice %75 {offsets = [0, 0, 0], sizes = [3, 1, 32], strides = [1, 1, 1]} : vector<3x3x32xf32> to vector<3x1x32xf32>
    %77 = vector.shape_cast %76 : vector<3x1x32xf32> to vector<3x32xf32>
    %c0_39 = arith.constant 0 : index
    %c0_40 = arith.constant 0 : index
    %78 = vector.load %arg7[%c0_39, %c0_40] : memref<96x32xf32, #tpu.memory_space<vmem>>, vector<32x32xf32>
    %cst_41 = arith.constant dense<0.000000e+00> : vector<3x32xf32>
    %79 = tpu.matmul %77, %78, %cst_41 {dimension_numbers = #tpu.dot_dimension_numbers<[1], [0], [0], [1], [0, 0, 1, 1], [], []>} : vector<3x32xf32>, vector<32x32xf32>, vector<3x32xf32> -> vector<3x32xf32>
    %80 = vector.extract_strided_slice %75 {offsets = [0, 1, 0], sizes = [3, 1, 32], strides = [1, 1, 1]} : vector<3x3x32xf32> to vector<3x1x32xf32>
    %81 = vector.shape_cast %80 : vector<3x1x32xf32> to vector<3x32xf32>
    %c32 = arith.constant 32 : index
    %c0_42 = arith.constant 0 : index
    %82 = vector.load %arg7[%c32, %c0_42] : memref<96x32xf32, #tpu.memory_space<vmem>>, vector<32x32xf32>
    %cst_43 = arith.constant dense<0.000000e+00> : vector<3x32xf32>
    %83 = tpu.matmul %81, %82, %cst_43 {dimension_numbers = #tpu.dot_dimension_numbers<[1], [0], [0], [1], [0, 0, 1, 1], [], []>} : vector<3x32xf32>, vector<32x32xf32>, vector<3x32xf32> -> vector<3x32xf32>
    %84 = arith.addf %79, %83 : vector<3x32xf32>
    %85 = vector.extract_strided_slice %75 {offsets = [0, 2, 0], sizes = [3, 1, 32], strides = [1, 1, 1]} : vector<3x3x32xf32> to vector<3x1x32xf32>
    %86 = vector.shape_cast %85 : vector<3x1x32xf32> to vector<3x32xf32>
    %c64 = arith.constant 64 : index
    %c0_44 = arith.constant 0 : index
    %87 = vector.load %arg7[%c64, %c0_44] : memref<96x32xf32, #tpu.memory_space<vmem>>, vector<32x32xf32>
    %cst_45 = arith.constant dense<0.000000e+00> : vector<3x32xf32>
    %88 = tpu.matmul %86, %87, %cst_45 {dimension_numbers = #tpu.dot_dimension_numbers<[1], [0], [0], [1], [0, 0, 1, 1], [], []>} : vector<3x32xf32>, vector<32x32xf32>, vector<3x32xf32> -> vector<3x32xf32>
    %89 = arith.addf %84, %88 : vector<3x32xf32>
    %c0_46 = arith.constant 0 : index
    %c0_47 = arith.constant 0 : index
    %90 = vector.load %arg8[%c0_46, %c0_47] : memref<1x32xf32, #tpu.memory_space<vmem>>, vector<1x32xf32>
    %91 = vector.broadcast %90 : vector<1x32xf32> to vector<3x32xf32>
    %92 = arith.addf %89, %91 : vector<3x32xf32>
    %cst_48 = arith.constant 5.65685415 : f32
    %93 = vector.broadcast %cst_48 : f32 to vector<3x32xf32>
    %94 = arith.mulf %92, %93 : vector<3x32xf32>
    %c0_49 = arith.constant 0 : index
    %c0_50 = arith.constant 0 : index
    %95 = vector.load %arg9[%c0_49, %c0_50] : memref<3x32xf32, #tpu.memory_space<vmem>>, vector<3x32xf32>
    %96 = arith.addf %94, %95 : vector<3x32xf32>
    %cst_51 = arith.constant dense<0.000000e+00> : vector<3xf32>
    %97 = vector.multi_reduction <add>, %96, %cst_51 [1] : vector<3x32xf32> to vector<3xf32>
    %98 = vector.shape_cast %97 : vector<3xf32> to vector<3x1xf32>
    %cst_52 = arith.constant 3.200000e+01 : f32
    %99 = vector.broadcast %cst_52 : f32 to vector<3x1xf32>
    %100 = arith.divf %98, %99 : vector<3x1xf32>
    %101 = vector.broadcast %100 : vector<3x1xf32> to vector<3x32xf32>
    %102 = arith.subf %96, %101 : vector<3x32xf32>
    %103 = arith.mulf %102, %102 : vector<3x32xf32>
    %cst_53 = arith.constant dense<0.000000e+00> : vector<3xf32>
    %104 = vector.multi_reduction <add>, %103, %cst_53 [1] : vector<3x32xf32> to vector<3xf32>
    %105 = vector.shape_cast %104 : vector<3xf32> to vector<3x1xf32>
    %cst_54 = arith.constant 3.200000e+01 : f32
    %106 = vector.broadcast %cst_54 : f32 to vector<3x1xf32>
    %107 = arith.divf %105, %106 : vector<3x1xf32>
    %cst_55 = arith.constant 9.99999974E-6 : f32
    %108 = vector.broadcast %cst_55 : f32 to vector<3x1xf32>
    %109 = arith.addf %107, %108 : vector<3x1xf32>
    %110 = math.rsqrt %109 : vector<3x1xf32>
    %111 = vector.broadcast %110 : vector<3x1xf32> to vector<3x32xf32>
    %112 = arith.mulf %102, %111 : vector<3x32xf32>
    %c0_56 = arith.constant 0 : index
    %c0_57 = arith.constant 0 : index
    %113 = vector.load %arg10[%c0_56, %c0_57] : memref<1x32xf32, #tpu.memory_space<vmem>>, vector<1x32xf32>
    %114 = vector.broadcast %113 : vector<1x32xf32> to vector<3x32xf32>
    %115 = arith.mulf %112, %114 : vector<3x32xf32>
    %c0_58 = arith.constant 0 : index
    %c0_59 = arith.constant 0 : index
    %116 = vector.load %arg11[%c0_58, %c0_59] : memref<1x32xf32, #tpu.memory_space<vmem>>, vector<1x32xf32>
    %117 = vector.broadcast %116 : vector<1x32xf32> to vector<3x32xf32>
    %118 = arith.addf %115, %117 : vector<3x32xf32>
    %c0_60 = arith.constant 0 : index
    %c0_61 = arith.constant 0 : index
    %c0_62 = arith.constant 0 : index
    %119 = vector.load %arg12[%c0_60, %c0_61, %c0_62] : memref<1x3x32xf32, #tpu.memory_space<vmem>>, vector<1x3x32xf32>
    %120 = vector.shape_cast %119 : vector<1x3x32xf32> to vector<3x32xf32>
    %121 = vector.shape_cast %118 : vector<3x32xf32> to vector<1x3x32xf32>
    tpu.vector_store %arg12[%c0_60, %c0_61, %c0_62], %121 {strides = array<i32>} : memref<1x3x32xf32, #tpu.memory_space<vmem>>, vector<1x3x32xf32>,
    return
  }
  func.func @transform_0(%arg0: i32, %arg1: i32) -> (i32, i32, i32, i32) {
    %c0_i32 = arith.constant 0 : i32
    %c0_i32_0 = arith.constant 0 : i32
    %c0_i32_1 = arith.constant 0 : i32
    return %arg0, %arg1, %c0_i32, %c0_i32_0 : i32, i32, i32, i32
  }
  func.func @transform_1(%arg0: i32, %arg1: i32) -> (i32, i32) {
    %c0_i32 = arith.constant 0 : i32
    %c0_i32_0 = arith.constant 0 : i32
    %c0_i32_1 = arith.constant 0 : i32
    return %c0_i32, %c0_i32_0 : i32, i32
  }
  func.func @transform_2(%arg0: i32, %arg1: i32) -> (i32, i32) {
    %c0_i32 = arith.constant 0 : i32
    %c0_i32_0 = arith.constant 0 : i32
    %c0_i32_1 = arith.constant 0 : i32
    return %c0_i32, %c0_i32_0 : i32, i32
  }
  func.func @transform_3(%arg0: i32, %arg1: i32) -> (i32, i32, i32) {
    %c0_i32 = arith.constant 0 : i32
    %c0_i32_0 = arith.constant 0 : i32
    %c0_i32_1 = arith.constant 0 : i32
    %c0_i32_2 = arith.constant 0 : i32
    return %c0_i32, %c0_i32_0, %c0_i32_1 : i32, i32, i32
  }
  func.func @transform_4(%arg0: i32, %arg1: i32) -> (i32, i32) {
    %c0_i32 = arith.constant 0 : i32
    %c0_i32_0 = arith.constant 0 : i32
    %c0_i32_1 = arith.constant 0 : i32
    return %c0_i32, %c0_i32_0 : i32, i32
  }
  func.func @transform_5(%arg0: i32, %arg1: i32) -> (i32, i32) {
    %c0_i32 = arith.constant 0 : i32
    %c0_i32_0 = arith.constant 0 : i32
    %c0_i32_1 = arith.constant 0 : i32
    return %c0_i32, %c0_i32_0 : i32, i32
  }
  func.func @transform_6(%arg0: i32, %arg1: i32) -> (i32, i32) {
    %c0_i32 = arith.constant 0 : i32
    %c0_i32_0 = arith.constant 0 : i32
    %c0_i32_1 = arith.constant 0 : i32
    return %c0_i32, %c0_i32_0 : i32, i32
  }
  func.func @transform_7(%arg0: i32, %arg1: i32) -> (i32, i32) {
    %c0_i32 = arith.constant 0 : i32
    %c0_i32_0 = arith.constant 0 : i32
    return %arg1, %c0_i32 : i32, i32
  }
  func.func @transform_8(%arg0: i32, %arg1: i32) -> (i32, i32) {
    %c0_i32 = arith.constant 0 : i32
    %c0_i32_0 = arith.constant 0 : i32
    %c0_i32_1 = arith.constant 0 : i32
    return %c0_i32, %c0_i32_0 : i32, i32
  }
  func.func @transform_9(%arg0: i32, %arg1: i32) -> (i32, i32) {
    %c0_i32 = arith.constant 0 : i32
    %c0_i32_0 = arith.constant 0 : i32
    %c0_i32_1 = arith.constant 0 : i32
    return %c0_i32, %c0_i32_0 : i32, i32
  }
  func.func @transform_10(%arg0: i32, %arg1: i32) -> (i32, i32, i32) {
    %c0_i32 = arith.constant 0 : i32
    %c0_i32_0 = arith.constant 0 : i32
    return %arg0, %arg1, %c0_i32 : i32, i32, i32
  }
}

</mosaic_0001>

<llo_original>
// kernel: tpu_custom_call.1
$region0: #{tpu_custom_call.1}
  #allocation0 [shape = 'u32[]', space=smem, size = 0x4, offset = 0x4, fixed_abs, tag = 'smem constant byte address 0x4 - core index']
  #allocation1 [shape = 'u32[72,128]{1,0:T(1,128)}', space=vmem, size = 0x9000, scoped, tag = 'internal scratch']
  %s0 = inlined_call_operand.vmem [shape: f32[2,1,64,9], index: 0, kind: input, shape index: {}]
  %s1 = inlined_call_operand.vmem [shape: f32[9,32], index: 1, kind: input, shape index: {}]
  %s2 = inlined_call_operand.vmem [shape: f32[1,32], index: 2, kind: input, shape index: {}]
  %s3 = inlined_call_operand.hbm [shape: f32[9,32,32], index: 3, kind: input, shape index: {}]
  %s4 = inlined_call_operand.vmem [shape: f32[1,32], index: 4, kind: input, shape index: {}]
  %s5 = inlined_call_operand.vmem [shape: f32[96,32], index: 5, kind: input, shape index: {}]
  %s6 = inlined_call_operand.vmem [shape: f32[1,32], index: 6, kind: input, shape index: {}]
  %s7 = inlined_call_operand.vmem [shape: f32[3,32], index: 7, kind: input, shape index: {}]
  %s8 = inlined_call_operand.vmem [shape: f32[1,32], index: 8, kind: input, shape index: {}]
  %s9 = inlined_call_operand.vmem [shape: f32[1,32], index: 9, kind: input, shape index: {}]
  %s10 = inlined_call_operand.vmem [shape: f32[2,3,32], index: 10, kind: output, shape index: {}]
  %s11 = sld [smem:[#allocation0]]
  $region77: #{tpu_custom_call.1} parent=0
    _
  %s13 = ssub.s32 1, %s11
  %s14 = scalar_select 0, %s13, %s11
  $region1: #{tpu_custom_call.1} parent=0
    #allocation2 [shape = 'u8[147456]{0}', space=vmem, size = 0x24000, scoped, tag = 'input window, operand 3, single buffered']
    #allocation3 [shape = 's32[2]{0}', space=sflag, size = 0x8, scoped, tag = 'scoped memory for tpu_custom_call.1']
    %15 = vsyncpa [#allocation3], 0
    loop: start=0, step=1, limit=4
    $region2: #{tpu_custom_call.1} parent=1 // loop_pre_header
      _
    $region3: #{tpu_custom_call.1} parent=1 // loop_header
      %s17 = sphi 0, %s21
      %p18 = scmp.ge.s32.totalorder %s17, 4
      %s24 = sphi 0, %s36
      %s25 = sphi 0, %s32
      %s26 = sphi 0, %s24
      %s27 = sphi 0, %s25
      %s28 = sphi 0, %s26
      %s29 = sphi 0, %s27
      %s41 = sphi 0, %s43
      %s44 = sphi 0, %s41
      %s45 = sphi 0, %s44
      %s61 = sphi 0, %s45
      %s65 = sphi 0, %s65
      %s67 = sphi 0, %s65
      %s68 = sphi 0, %s67
      %s82 = sphi 0, %s68
      %s86 = sphi 0, %s86
      %s88 = sphi 0, %s86
      %s89 = sphi 0, %s88
      %s103 = sphi 0, %s89
      %s107 = sphi 0, %s107
      %s109 = sphi 0, %s107
      %s110 = sphi 0, %s109
      %s124 = sphi 0, %s110
      %s128 = sphi 0, %s128
      %s130 = sphi 0, %s128
      %s131 = sphi 0, %s130
      %s145 = sphi 0, %s131
      %s149 = sphi 0, %s149
      %s151 = sphi 0, %s149
      %s152 = sphi 0, %s151
      %s166 = sphi 0, %s152
      %s170 = sphi 0, %s170
      %s172 = sphi 0, %s170
      %s173 = sphi 0, %s172
      %s187 = sphi 0, %s173
      %s193 = sphi 0, %s195
      %s196 = sphi 0, %s193
      %s197 = sphi 0, %s196
      %s213 = sphi 0, %s197
      %s217 = sphi 0, %s217
      %s219 = sphi 0, %s217
      %s220 = sphi 0, %s219
      %s234 = sphi 0, %s220
      %s238 = sphi 0, %s238
      %s240 = sphi 0, %s238
      %s241 = sphi 0, %s240
      %s255 = sphi 0, %s241
      %s263 = sphi 0, %s265
      %s266 = sphi 0, %s263
      %s267 = sphi 0, %s266
      %s283 = sphi 0, %s267
    $region4: #{tpu_custom_call.1} parent=1 // loop_header_branch
      %20 = sbr.rel (%p18) target = $region8
    $region5: #{tpu_custom_call.1} parent=1 // loop_body
      %s22 = ssub.s32 %s17, 1
      %s23 = ssub.s32 %s17, 2
      %s30 = sadd.s32 1, %s25
      %p31 = scmp.ge.s32.totalorder %s30, 1
      %s32 = scalar_select %p31, 0, %s30
      %s33 = sadd.s32 1, %s24
      %s34 = scalar_select %p31, %s33, %s24
      %p35 = scmp.ge.s32.totalorder %s34, 2
      %s36 = scalar_select %p35, 0, %s34
      %s37 = ssub.s32 %s24, %s36
      %s38 = ssub.s32 %s25, %s32
      %s39 = sor.u32 %s37, %s38
      %p40 = scmp.eq.s32.totalorder %s39, 0
      %s42 = sadd.s32 %s41, 1
      %s43 = scalar_select %p40, %s41, %s42
      %p46 = pneg %p40
      %p47 = scmp.eq.s32.totalorder %s17, 1
      %p48 = por %p46, %p47
      %p49 = scmp.ne.s32.totalorder %s41, %s44
      %p50 = scmp.eq.s32.totalorder %s17, 0
      %p51 = por %p49, %p50
      %p52 = scmp.ne.s32.totalorder %s41, %s44
      %p53 = scmp.eq.s32.totalorder %s22, 1
      %p54 = por %p52, %p53
      %p55 = scmp.ne.s32.totalorder %s44, %s45
      %p56 = scmp.eq.s32.totalorder %s22, 0
      %p57 = por %p55, %p56
      %p58 = scmp.ne.s32.totalorder %s44, %s45
      %p59 = scmp.eq.s32.totalorder %s23, 1
      %p60 = por %p58, %p59
      %p62 = scmp.ne.s32.totalorder %s45, %s61
      %p63 = scmp.eq.s32.totalorder %s23, 0
      %p64 = por %p62, %p63
      %s66 = sadd.s32 %s65, 1
      %p69 = scmp.eq.s32.totalorder %s17, 1
      %p70 = scmp.ne.s32.totalorder %s65, %s67
      %p71 = scmp.eq.s32.totalorder %s17, 0
      %p72 = por %p70, %p71
      %p73 = scmp.ne.s32.totalorder %s65, %s67
      %p74 = scmp.eq.s32.totalorder %s22, 1
      %p75 = por %p73, %p74
      %p76 = scmp.ne.s32.totalorder %s67, %s68
      %p77 = scmp.eq.s32.totalorder %s22, 0
      %p78 = por %p76, %p77
      %p79 = scmp.ne.s32.totalorder %s67, %s68
      %p80 = scmp.eq.s32.totalorder %s23, 1
      %p81 = por %p79, %p80
      %p83 = scmp.ne.s32.totalorder %s68, %s82
      %p84 = scmp.eq.s32.totalorder %s23, 0
      %p85 = por %p83, %p84
      %s87 = sadd.s32 %s86, 1
      %p90 = scmp.eq.s32.totalorder %s17, 1
      %p91 = scmp.ne.s32.totalorder %s86, %s88
      %p92 = scmp.eq.s32.totalorder %s17, 0
      %p93 = por %p91, %p92
      %p94 = scmp.ne.s32.totalorder %s86, %s88
      %p95 = scmp.eq.s32.totalorder %s22, 1
      %p96 = por %p94, %p95
      %p97 = scmp.ne.s32.totalorder %s88, %s89
      %p98 = scmp.eq.s32.totalorder %s22, 0
      %p99 = por %p97, %p98
      %p100 = scmp.ne.s32.totalorder %s88, %s89
      %p101 = scmp.eq.s32.totalorder %s23, 1
      %p102 = por %p100, %p101
      %p104 = scmp.ne.s32.totalorder %s89, %s103
      %p105 = scmp.eq.s32.totalorder %s23, 0
      %p106 = por %p104, %p105
      %s108 = sadd.s32 %s107, 1
      %p111 = scmp.eq.s32.totalorder %s17, 1
      %p112 = scmp.ne.s32.totalorder %s107, %s109
      %p113 = scmp.eq.s32.totalorder %s17, 0
      %p114 = por %p112, %p113
      %p115 = scmp.ne.s32.totalorder %s107, %s109
      %p116 = scmp.eq.s32.totalorder %s22, 1
      %p117 = por %p115, %p116
      %p118 = scmp.ne.s32.totalorder %s109, %s110
      %p119 = scmp.eq.s32.totalorder %s22, 0
      %p120 = por %p118, %p119
      %p121 = scmp.ne.s32.totalorder %s109, %s110
      %p122 = scmp.eq.s32.totalorder %s23, 1
      %p123 = por %p121, %p122
      %p125 = scmp.ne.s32.totalorder %s110, %s124
      %p126 = scmp.eq.s32.totalorder %s23, 0
      %p127 = por %p125, %p126
      %s129 = sadd.s32 %s128, 1
      %p132 = scmp.eq.s32.totalorder %s17, 1
      %p133 = scmp.ne.s32.totalorder %s128, %s130
      %p134 = scmp.eq.s32.totalorder %s17, 0
      %p135 = por %p133, %p134
      %p136 = scmp.ne.s32.totalorder %s128, %s130
      %p137 = scmp.eq.s32.totalorder %s22, 1
      %p138 = por %p136, %p137
      %p139 = scmp.ne.s32.totalorder %s130, %s131
      %p140 = scmp.eq.s32.totalorder %s22, 0
      %p141 = por %p139, %p140
      %p142 = scmp.ne.s32.totalorder %s130, %s131
      %p143 = scmp.eq.s32.totalorder %s23, 1
      %p144 = por %p142, %p143
      %p146 = scmp.ne.s32.totalorder %s131, %s145
      %p147 = scmp.eq.s32.totalorder %s23, 0
      %p148 = por %p146, %p147
      %s150 = sadd.s32 %s149, 1
      %p153 = scmp.eq.s32.totalorder %s17, 1
      %p154 = scmp.ne.s32.totalorder %s149, %s151
      %p155 = scmp.eq.s32.totalorder %s17, 0
      %p156 = por %p154, %p155
      %p157 = scmp.ne.s32.totalorder %s149, %s151
      %p158 = scmp.eq.s32.totalorder %s22, 1
      %p159 = por %p157, %p158
      %p160 = scmp.ne.s32.totalorder %s151, %s152
      %p161 = scmp.eq.s32.totalorder %s22, 0
      %p162 = por %p160, %p161
      %p163 = scmp.ne.s32.totalorder %s151, %s152
      %p164 = scmp.eq.s32.totalorder %s23, 1
      %p165 = por %p163, %p164
      %p167 = scmp.ne.s32.totalorder %s152, %s166
      %p168 = scmp.eq.s32.totalorder %s23, 0
      %p169 = por %p167, %p168
      %s171 = sadd.s32 %s170, 1
      %p174 = scmp.eq.s32.totalorder %s17, 1
      %p175 = scmp.ne.s32.totalorder %s170, %s172
      %p176 = scmp.eq.s32.totalorder %s17, 0
      %p177 = por %p175, %p176
      %p178 = scmp.ne.s32.totalorder %s170, %s172
      %p179 = scmp.eq.s32.totalorder %s22, 1
      %p180 = por %p178, %p179
      %p181 = scmp.ne.s32.totalorder %s172, %s173
      %p182 = scmp.eq.s32.totalorder %s22, 0
      %p183 = por %p181, %p182
      %p184 = scmp.ne.s32.totalorder %s172, %s173
      %p185 = scmp.eq.s32.totalorder %s23, 1
      %p186 = por %p184, %p185
      %p188 = scmp.ne.s32.totalorder %s173, %s187
      %p189 = scmp.eq.s32.totalorder %s23, 0
      %p190 = por %p188, %p189
      %s191 = ssub.s32 %s25, %s32
      %p192 = scmp.eq.s32.totalorder %s191, 0
      %s194 = sadd.s32 %s193, 1
      %s195 = scalar_select %p192, %s193, %s194
      %p198 = pneg %p192
      %p199 = scmp.eq.s32.totalorder %s17, 1
      %p200 = por %p198, %p199
      %p201 = scmp.ne.s32.totalorder %s193, %s196
      %p202 = scmp.eq.s32.totalorder %s17, 0
      %p203 = por %p201, %p202
      %p204 = scmp.ne.s32.totalorder %s193, %s196
      %p205 = scmp.eq.s32.totalorder %s22, 1
      %p206 = por %p204, %p205
      %p207 = scmp.ne.s32.totalorder %s196, %s197
      %p208 = scmp.eq.s32.totalorder %s22, 0
      %p209 = por %p207, %p208
      %p210 = scmp.ne.s32.totalorder %s196, %s197
      %p211 = scmp.eq.s32.totalorder %s23, 1
      %p212 = por %p210, %p211
      %p214 = scmp.ne.s32.totalorder %s197, %s213
      %p215 = scmp.eq.s32.totalorder %s23, 0
      %p216 = por %p214, %p215
      %s218 = sadd.s32 %s217, 1
      %p221 = scmp.eq.s32.totalorder %s17, 1
      %p222 = scmp.ne.s32.totalorder %s217, %s219
      %p223 = scmp.eq.s32.totalorder %s17, 0
      %p224 = por %p222, %p223
      %p225 = scmp.ne.s32.totalorder %s217, %s219
      %p226 = scmp.eq.s32.totalorder %s22, 1
      %p227 = por %p225, %p226
      %p228 = scmp.ne.s32.totalorder %s219, %s220
      %p229 = scmp.eq.s32.totalorder %s22, 0
      %p230 = por %p228, %p229
      %p231 = scmp.ne.s32.totalorder %s219, %s220
      %p232 = scmp.eq.s32.totalorder %s23, 1
      %p233 = por %p231, %p232
      %p235 = scmp.ne.s32.totalorder %s220, %s234
      %p236 = scmp.eq.s32.totalorder %s23, 0
      %p237 = por %p235, %p236
      %s239 = sadd.s32 %s238, 1
      %p242 = scmp.eq.s32.totalorder %s17, 1
      %p243 = scmp.ne.s32.totalorder %s238, %s240
      %p244 = scmp.eq.s32.totalorder %s17, 0
      %p245 = por %p243, %p244
      %p246 = scmp.ne.s32.totalorder %s238, %s240
      %p247 = scmp.eq.s32.totalorder %s22, 1
      %p248 = por %p246, %p247
      %p249 = scmp.ne.s32.totalorder %s240, %s241
      %p250 = scmp.eq.s32.totalorder %s22, 0
      %p251 = por %p249, %p250
      %p252 = scmp.ne.s32.totalorder %s240, %s241
      %p253 = scmp.eq.s32.totalorder %s23, 1
      %p254 = por %p252, %p253
      %p256 = scmp.ne.s32.totalorder %s241, %s255
      %p257 = scmp.eq.s32.totalorder %s23, 0
      %p258 = por %p256, %p257
      %s259 = ssub.s32 %s24, %s36
      %s260 = ssub.s32 %s25, %s32
      %s261 = sor.u32 %s259, %s260
      %p262 = scmp.eq.s32.totalorder %s261, 0
      %s264 = sadd.s32 %s263, 1
      %s265 = scalar_select %p262, %s263, %s264
      %p268 = pneg %p262
      %p269 = scmp.eq.s32.totalorder %s17, 1
      %p270 = por %p268, %p269
      %p271 = scmp.ne.s32.totalorder %s263, %s266
      %p272 = scmp.eq.s32.totalorder %s17, 0
      %p273 = por %p271, %p272
      %p274 = scmp.ne.s32.totalorder %s263, %s266
      %p275 = scmp.eq.s32.totalorder %s22, 1
      %p276 = por %p274, %p275
      %p277 = scmp.ne.s32.totalorder %s266, %s267
      %p278 = scmp.eq.s32.totalorder %s22, 0
      %p279 = por %p277, %p278
      %p280 = scmp.ne.s32.totalorder %s266, %s267
      %p281 = scmp.eq.s32.totalorder %s23, 1
      %p282 = por %p280, %p281
      %p284 = scmp.ne.s32.totalorder %s267, %s283
      %p285 = scmp.eq.s32.totalorder %s23, 0
      %p286 = por %p284, %p285
      %p287 = scmp.le.s32.totalorder 1, %s17
      %p288 = scmp.lt.s32.totalorder %s17, 3
      %p289 = pnand %p287, %p288
      %p290 = pneg %p289
      // Predicated region
      $region9: #{tpu_custom_call.1} parent=5 // pred_check
        _
      $region10: #{tpu_custom_call.1} parent=5 // pred_check_branch
        %292 = sbr.rel (%p289) target = $region12
      $region11: #{tpu_custom_call.1} parent=5 // pred_region
        %s293 = ssub.s32 %s17, 1
        // Predicated region
        $region13: #{tpu_custom_call.1} parent=11 // pred_check
          %p294 = pneg %p78
        $region14: #{tpu_custom_call.1} parent=11 // pred_check_branch
          %296 = sbr.rel (%p294) target = $region16
        $region15: #{tpu_custom_call.1} parent=11 // pred_region
          _
        $region16: #{tpu_custom_call.1} parent=11 // pred_fallthru
          _
        // Predicated region
        $region17: #{tpu_custom_call.1} parent=11 // pred_check
          %p297 = pneg %p99
        $region18: #{tpu_custom_call.1} parent=11 // pred_check_branch
          %299 = sbr.rel (%p297) target = $region20
        $region19: #{tpu_custom_call.1} parent=11 // pred_region
          _
        $region20: #{tpu_custom_call.1} parent=11 // pred_fallthru
          _
        // Predicated region
        $region21: #{tpu_custom_call.1} parent=11 // pred_check
          %p300 = pneg %p120
        $region22: #{tpu_custom_call.1} parent=11 // pred_check_branch
          %302 = sbr.rel (%p300) target = $region24
        $region23: #{tpu_custom_call.1} parent=11 // pred_region
          %304 = vsyncadd [#allocation3], 0
          %s305 = sshll.u32 %s3, 4
          %s306 = int_to_ptr.hbm [resolvable:$true] %s305
          %s307 = sshll.u32 [#allocation2], 4
          %s308 = int_to_ptr.vmem [resolvable:$true] %s307
          %313 = dma.hbm_to_vmem [thread:$0]  %s306, 4608, %s308, [#allocation3], 128, 128, 8
        $region24: #{tpu_custom_call.1} parent=11 // pred_fallthru
          _
        // Predicated region
        $region25: #{tpu_custom_call.1} parent=11 // pred_check
          %p314 = pneg %p141
        $region26: #{tpu_custom_call.1} parent=11 // pred_check_branch
          %316 = sbr.rel (%p314) target = $region28
        $region27: #{tpu_custom_call.1} parent=11 // pred_region
          _
        $region28: #{tpu_custom_call.1} parent=11 // pred_fallthru
          _
        // Predicated region
        $region29: #{tpu_custom_call.1} parent=11 // pred_check
          %p317 = pneg %p162
        $region30: #{tpu_custom_call.1} parent=11 // pred_check_branch
          %319 = sbr.rel (%p317) target = $region32
        $region31: #{tpu_custom_call.1} parent=11 // pred_region
          _
        $region32: #{tpu_custom_call.1} parent=11 // pred_fallthru
          _
        // Predicated region
        $region33: #{tpu_custom_call.1} parent=11 // pred_check
          %p320 = pneg %p183
        $region34: #{tpu_custom_call.1} parent=11 // pred_check_branch
          %322 = sbr.rel (%p320) target = $region36
        $region35: #{tpu_custom_call.1} parent=11 // pred_region
          _
        $region36: #{tpu_custom_call.1} parent=11 // pred_fallthru
          _
        // Predicated region
        $region37: #{tpu_custom_call.1} parent=11 // pred_check
          %p323 = pneg %p209
        $region38: #{tpu_custom_call.1} parent=11 // pred_check_branch
          %325 = sbr.rel (%p323) target = $region40
        $region39: #{tpu_custom_call.1} parent=11 // pred_region
          %p326 = scmp.lt.s32.totalorder %s27, 0
          %s327 = scalar_select %p326, %s27, 0
          %s328 = smul.addr %s327, 4
          %s329 = scalar_lea.vmem %s7, %s328
        $region40: #{tpu_custom_call.1} parent=11 // pred_fallthru
          _
        // Predicated region
        $region41: #{tpu_custom_call.1} parent=11 // pred_check
          %p330 = pneg %p230
        $region42: #{tpu_custom_call.1} parent=11 // pred_check_branch
          %332 = sbr.rel (%p330) target = $region44
        $region43: #{tpu_custom_call.1} parent=11 // pred_region
          _
        $region44: #{tpu_custom_call.1} parent=11 // pred_fallthru
          _
        // Predicated region
        $region45: #{tpu_custom_call.1} parent=11 // pred_check
          %p333 = pneg %p251
        $region46: #{tpu_custom_call.1} parent=11 // pred_check_branch
          %335 = sbr.rel (%p333) target = $region48
        $region47: #{tpu_custom_call.1} parent=11 // pred_region
          _
        $region48: #{tpu_custom_call.1} parent=11 // pred_fallthru
          _
      $region12: #{tpu_custom_call.1} parent=5 // pred_fallthru
        _
      %p336 = scmp.lt.s32.totalorder %s17, 2
      // Predicated region
      $region49: #{tpu_custom_call.1} parent=5 // pred_check
        %p337 = pneg %p336
      $region50: #{tpu_custom_call.1} parent=5 // pred_check_branch
        %339 = sbr.rel (%p337) target = $region52
      $region51: #{tpu_custom_call.1} parent=5 // pred_region
        // Predicated region
        $region53: #{tpu_custom_call.1} parent=51 // pred_check
          %p340 = pneg %p51
        $region54: #{tpu_custom_call.1} parent=51 // pred_check_branch
          %342 = sbr.rel (%p340) target = $region56
        $region55: #{tpu_custom_call.1} parent=51 // pred_region
          %p343 = scmp.lt.s32.totalorder %s24, 1
          %s344 = scalar_select %p343, %s24, 1
          %p345 = scmp.lt.s32.totalorder %s25, 0
          %s346 = scalar_select %p345, %s25, 0
          %s347 = smul.addr %s346, 8
          %s348 = smul.addr %s344, 8
          %s349 = sadd.s32 %s347, %s348
          %s350 = smul.addr %s349, 8
          %s351 = scalar_lea.vmem %s0, %s350
        $region56: #{tpu_custom_call.1} parent=51 // pred_fallthru
          _
      $region52: #{tpu_custom_call.1} parent=5 // pred_fallthru
        _
      %p352 = scmp.le.s32.totalorder 1, %s17
      %p353 = scmp.lt.s32.totalorder %s17, 3
      %p354 = pnand %p352, %p353
      %p355 = pneg %p354
      // Predicated region
      $region57: #{tpu_custom_call.1} parent=5 // pred_check
        _
      $region58: #{tpu_custom_call.1} parent=5 // pred_check_branch
        %357 = sbr.rel (%p354) target = $region60
      $region59: #{tpu_custom_call.1} parent=5 // pred_region
        %s358 = ssub.s32 %s17, 1
        // Predicated region
        $region61: #{tpu_custom_call.1} parent=59 // pred_check
          %p359 = pneg %p120
        $region62: #{tpu_custom_call.1} parent=59 // pred_check_branch
          %361 = sbr.rel (%p359) target = $region64
        $region63: #{tpu_custom_call.1} parent=59 // pred_region
          %363 = dma.done [#allocation3], 4608
        $region64: #{tpu_custom_call.1} parent=59 // pred_fallthru
          _
        %p364 = scmp.lt.s32.totalorder %s26, 1
        %s365 = scalar_select %p364, %s26, 1
        %p366 = scmp.lt.s32.totalorder %s27, 0
        %s367 = scalar_select %p366, %s27, 0
        %s368 = smul.addr %s367, 8
        %s369 = smul.addr %s365, 8
        %s370 = sadd.s32 %s368, %s369
        %s371 = smul.addr %s370, 8
        %s372 = scalar_lea.vmem %s0, %s371
        %p373 = pneg %p57
        %p374 = pneg %p54
        %p375 = pneg %p78
        %p376 = pneg %p75
        %p377 = pneg %p99
        %p378 = pneg %p96
        %p379 = pneg %p120
        %p380 = pneg %p117
        %p381 = pneg %p141
        %p382 = pneg %p138
        %p383 = pneg %p162
        %p384 = pneg %p159
        %p385 = pneg %p183
        %p386 = pneg %p180
        %p387 = scmp.lt.s32.totalorder %s27, 0
        %s388 = scalar_select %p387, %s27, 0
        %s389 = smul.addr %s388, 4
        %s390 = scalar_lea.vmem %s7, %s389
        %p391 = pneg %p209
        %p392 = pneg %p206
        %p393 = pneg %p230
        %p394 = pneg %p227
        %p395 = pneg %p251
        %p396 = pneg %p248
        %p397 = pneg %p279
        %p398 = pneg %p276
        %p399 = scmp.lt.s32.totalorder %s26, 1
        %s400 = scalar_select %p399, %s26, 1
        %p401 = scmp.lt.s32.totalorder %s27, 0
        %s402 = scalar_select %p401, %s27, 0
        %s403 = sadd.s32 %s402, %s400
        %s404 = smul.addr %s403, 4
        %s405 = scalar_lea.vmem %s10, %s404
        %p406 = scmp.lt.s32.totalorder %s26, 1
        %s407 = scalar_select %p406, %s26, 1
        %p408 = scmp.lt.s32.totalorder %s27, 0
        %s409 = scalar_select %p408, %s27, 0
        %s410 = smul.addr %s409, 8
        %s411 = smul.addr %s407, 8
        %s412 = sadd.s32 %s410, %s411
        %s413 = smul.addr %s412, 8
        %s414 = scalar_lea.vmem %s0, %s413
        %p415 = scmp.lt.s32.totalorder %s27, 0
        %s416 = scalar_select %p415, %s27, 0
        %s417 = smul.addr %s416, 4
        %s418 = scalar_lea.vmem %s7, %s417
        %p419 = scmp.lt.s32.totalorder %s26, 1
        %s420 = scalar_select %p419, %s26, 1
        %p421 = scmp.lt.s32.totalorder %s27, 0
        %s422 = scalar_select %p421, %s27, 0
        %s423 = sadd.s32 %s422, %s420
        %s424 = smul.addr %s423, 4
        %s425 = scalar_lea.vmem %s10, %s424
        %v426 = vld [vmem:[%s414] sm:$0xff]
        %v427 = vld [vmem:[%s414 + $0x8] sm:$0xff]
        %v428 = vld [vmem:[%s414 + $0x10] sm:$0xff]
        %v429 = vld [vmem:[%s414 + $0x18] sm:$0xff]
        %v430 = vld [vmem:[%s414 + $0x20] sm:$0xff]
        %v431 = vld [vmem:[%s414 + $0x28] sm:$0xff]
        %v432 = vld [vmem:[%s414 + $0x30] sm:$0xff]
        %v433 = vld [vmem:[%s414 + $0x38] sm:$0xff]
        %v434 = vld [vmem:[%s1] sm:$0xff]
        %v435 = vld [vmem:[%s1 + $0x8] sm:$0x1]
        %v436 = vld [vmem:[%s2] sm:$0x1]
        %v438 = vperm.slane %v436, 0
        %vm440 = vcmask 72704
        %v442 = vsel %vm440, %v426, 0
        %v445 = vsel %vm440, %v427, 0
        %v448 = vsel %vm440, %v428, 0
        %v451 = vsel %vm440, %v429, 0
        %v454 = vsel %vm440, %v430, 0
        %v457 = vsel %vm440, %v431, 0
        %v460 = vsel %vm440, %v432, 0
        %v463 = vsel %vm440, %v433, 0
        %vm465 = vcmask 1040384
        %v467 = vsel %vm465, %v435, 0
        %469 = vmatpush.msra.mxu0 0.0
        %470 = vmatpush.msra.mxu0 0.0
        %471 = vmatpush.msra.mxu0 0.0
        %472 = vmatpush.msra.mxu0 0.0
        %473 = vmatpush.msra.mxu0 0.0
        %474 = vmatpush.msra.mxu0 0.0
        %475 = vmatpush.msra.mxu0 0.0
        %476 = vmatpush.msra.mxu0 0.0
        %477 = vmatpush.msra.mxu0 0.0
        %478 = vmatpush.msra.mxu0 0.0
        %479 = vmatpush.msra.mxu0 0.0
        %480 = vmatpush.msra.mxu0 0.0
        %481 = vmatpush.msra.mxu0 0.0
        %482 = vmatpush.msra.mxu0 0.0
        %483 = vmatpush.msra.mxu0 %v467
        %484 = vmatpush.msra.mxu0 %v434
        %485 = vmatmul.f32.gmra.mxu0 %v442
        %v486 = vpop.f32.mrf.mxu0
        %v487 = vadd.f32 %v438, %v486
        %488 = vmatmul.f32.gmra.mxu0 %v445
        %v489 = vpop.f32.mrf.mxu0
        %v490 = vadd.f32 %v438, %v489
        %491 = vmatmul.f32.gmra.mxu0 %v448
        %v492 = vpop.f32.mrf.mxu0
        %v493 = vadd.f32 %v438, %v492
        %494 = vmatmul.f32.gmra.mxu0 %v451
        %v495 = vpop.f32.mrf.mxu0
        %v496 = vadd.f32 %v438, %v495
        %497 = vmatmul.f32.gmra.mxu0 %v454
        %v498 = vpop.f32.mrf.mxu0
        %v499 = vadd.f32 %v438, %v498
        %500 = vmatmul.f32.gmra.mxu0 %v457
        %v501 = vpop.f32.mrf.mxu0
        %v502 = vadd.f32 %v438, %v501
        %503 = vmatmul.f32.gmra.mxu0 %v460
        %v504 = vpop.f32.mrf.mxu0
        %v505 = vadd.f32 %v438, %v504
        %506 = vmatmul.f32.gmra.mxu0 %v463
        %v507 = vpop.f32.mrf.mxu0
        %v508 = vadd.f32 %v438, %v507
        %509 = vdwg.mxu0
        %v510 = vmax.f32 %v487, 0.0
        %v511 = vmax.f32 %v490, 0.0
        %v512 = vmax.f32 %v493, 0.0
        %v513 = vmax.f32 %v496, 0.0
        %v514 = vmax.f32 %v499, 0.0
        %v515 = vmax.f32 %v502, 0.0
        %v516 = vmax.f32 %v505, 0.0
        %v517 = vmax.f32 %v508, 0.0
        %v520 = vrot.slane %v510, 4
        %v521 = vrot.slane %v511, 4
        %v524 = vrot.slane %v512, 4
        %v525 = vrot.slane %v513, 4
        %v528 = vrot.slane %v514, 4
        %v531 = vrot.slane %v516, 4
        %v532 = vrot.slane %v510, 3
        %v533 = vrot.slane %v520, 3
        %v534 = vrot.slane %v511, 3
        %v535 = vsel %vm465, %v510, %v532
        %vm536 = vcmask 1041409
        %v537 = vsel %vm536, %v510, %v532
        %v538 = vrot.slane %v537, 1
        %vm539 = vcmask 1042434
        %v540 = vsel %vm539, %v510, %v532
        %v541 = vrot.slane %v540, 2
        %v542 = vsel %vm465, %v520, %v533
        %v543 = vsel %vm536, %v520, %v533
        %v544 = vrot.slane %v543, 1
        %v545 = vsel %vm539, %v520, %v533
        %v546 = vrot.slane %v545, 2
        %v547 = vsel %vm465, %v511, %v534
        %v548 = vsel %vm536, %v511, %v534
        %v549 = vrot.slane %v548, 1
        %v550 = vsel %vm539, %v511, %v534
        %v551 = vrot.slane %v550, 2
        %v552 = vld [vmem:[#allocation2] sm:$0xff]
        %v553 = vld [vmem:[#allocation2 + $0x8] sm:$0xff]
        %v554 = vld [vmem:[#allocation2 + $0x10] sm:$0xff]
        %v555 = vld [vmem:[#allocation2 + $0x18] sm:$0xff]
        %v556 = vrot.slane %v512, 3
        %v557 = vrot.slane %v524, 3
        %v558 = vrot.slane %v513, 3
        %v559 = vsel %vm465, %v512, %v556
        %v560 = vsel %vm536, %v512, %v556
        %v561 = vrot.slane %v560, 1
        %v562 = vsel %vm539, %v512, %v556
        %v563 = vrot.slane %v562, 2
        %v564 = vsel %vm465, %v524, %v557
        %v565 = vsel %vm536, %v524, %v557
        %v566 = vrot.slane %v565, 1
        %v567 = vsel %vm539, %v524, %v557
        %v568 = vrot.slane %v567, 2
        %v569 = vsel %vm465, %v513, %v558
        %v570 = vsel %vm536, %v513, %v558
        %v571 = vrot.slane %v570, 1
        %v572 = vsel %vm539, %v513, %v558
        %v573 = vrot.slane %v572, 2
        %s574 = scalar_lea.vmem [#allocation2], 32
        %v575 = vld [vmem:[%s574] sm:$0xff]
        %v576 = vld [vmem:[%s574 + $0x8] sm:$0xff]
        %v577 = vld [vmem:[%s574 + $0x10] sm:$0xff]
        %v578 = vld [vmem:[%s574 + $0x18] sm:$0xff]
        %579 = vst [vmem:[#allocation1] ss:$9 sm:$0xff] %v559
        %s580 = scalar_lea.vmem [#allocation1], 1
        %581 = vst [vmem:[%s580] ss:$9 sm:$0xff] %v561
        %s582 = scalar_lea.vmem [#allocation1], 2
        %583 = vst [vmem:[%s582] ss:$9 sm:$0xff] %v563
        %s584 = scalar_lea.vmem [#allocation1], 3
        %585 = vst [vmem:[%s584] ss:$9 sm:$0xff] %v564
        %s586 = scalar_lea.vmem [#allocation1], 4
        %587 = vst [vmem:[%s586] ss:$9 sm:$0xff] %v566
        %s588 = scalar_lea.vmem [#allocation1], 5
        %589 = vst [vmem:[%s588] ss:$9 sm:$0xff] %v568
        %s590 = scalar_lea.vmem [#allocation1], 6
        %591 = vst [vmem:[%s590] ss:$9 sm:$0xff] %v569
        %s592 = scalar_lea.vmem [#allocation1], 7
        %593 = vst [vmem:[%s592] ss:$9 sm:$0xff] %v571
        %v594 = vld [vmem:[#allocation1] sm:$0xff]
        %595 = vst [vmem:[#allocation1] ss:$9 sm:$0xff] %v573
        %v596 = vld [vmem:[#allocation1] sm:$0xff]
        %vm597 = vcmask 261120
        %v598 = vsel %vm597, %v594, 0
        %v600 = vsel %vm597, %v596, 0
        %602 = vmatpush.msra.mxu0 0.0
        %603 = vmatpush.msra.mxu0 0.0
        %604 = vmatpush.msra.mxu0 0.0
        %605 = vmatpush.msra.mxu0 0.0
        %606 = vmatpush.msra.mxu0 0.0
        %607 = vmatpush.msra.mxu0 0.0
        %608 = vmatpush.msra.mxu0 0.0
        %609 = vmatpush.msra.mxu0 0.0
        %610 = vmatpush.msra.mxu0 0.0
        %611 = vmatpush.msra.mxu0 0.0
        %612 = vmatpush.msra.mxu0 0.0
        %613 = vmatpush.msra.mxu0 0.0
        %614 = vmatpush.msra.mxu0 %v578
        %615 = vmatpush.msra.mxu0 %v577
        %616 = vmatpush.msra.mxu0 %v576
        %617 = vmatpush.msra.mxu0 %v575
        %618 = vmatmul.f32.gmra.mxu0 %v598
        %v619 = vpop.f32.mrf.mxu0
        %v620 = vadd.f32 0.0, %v619
        %621 = vmatmul.f32.gmra.mxu0 %v600
        %v622 = vpop.f32.mrf.mxu0
        %v623 = vadd.f32 0.0, %v622
        %624 = vdwg.mxu0
        %625 = vst [vmem:[#allocation1] ss:$9 sm:$0xff] %v535
        %s626 = scalar_lea.vmem [#allocation1], 1
        %627 = vst [vmem:[%s626] ss:$9 sm:$0xff] %v538
        %s628 = scalar_lea.vmem [#allocation1], 2
        %629 = vst [vmem:[%s628] ss:$9 sm:$0xff] %v541
        %s630 = scalar_lea.vmem [#allocation1], 3
        %631 = vst [vmem:[%s630] ss:$9 sm:$0xff] %v542
        %s632 = scalar_lea.vmem [#allocation1], 4
        %633 = vst [vmem:[%s632] ss:$9 sm:$0xff] %v544
        %s634 = scalar_lea.vmem [#allocation1], 5
        %635 = vst [vmem:[%s634] ss:$9 sm:$0xff] %v546
        %s636 = scalar_lea.vmem [#allocation1], 6
        %637 = vst [vmem:[%s636] ss:$9 sm:$0xff] %v547
        %s638 = scalar_lea.vmem [#allocation1], 7
        %639 = vst [vmem:[%s638] ss:$9 sm:$0xff] %v549
        %v640 = vld [vmem:[#allocation1] sm:$0xff]
        %641 = vst [vmem:[#allocation1] ss:$9 sm:$0xff] %v551
        %v642 = vld [vmem:[#allocation1] sm:$0xff]
        %v643 = vsel %vm597, %v640, 0
        %v645 = vsel %vm597, %v642, 0
        %647 = vmatpush.msra.mxu0 0.0
        %648 = vmatpush.msra.mxu0 0.0
        %649 = vmatpush.msra.mxu0 0.0
        %650 = vmatpush.msra.mxu0 0.0
        %651 = vmatpush.msra.mxu0 0.0
        %652 = vmatpush.msra.mxu0 0.0
        %653 = vmatpush.msra.mxu0 0.0
        %654 = vmatpush.msra.mxu0 0.0
        %655 = vmatpush.msra.mxu0 0.0
        %656 = vmatpush.msra.mxu0 0.0
        %657 = vmatpush.msra.mxu0 0.0
        %658 = vmatpush.msra.mxu0 0.0
        %659 = vmatpush.msra.mxu0 %v555
        %660 = vmatpush.msra.mxu0 %v554
        %661 = vmatpush.msra.mxu0 %v553
        %662 = vmatpush.msra.mxu0 %v552
        %663 = vmatmul.f32.gmra.mxu0 %v643
        %v664 = vpop.f32.mrf.mxu0
        %v665 = vadd.f32 %v620, %v664
        %666 = vmatmul.f32.gmra.mxu0 %v645
        %v667 = vpop.f32.mrf.mxu0
        %v668 = vadd.f32 %v623, %v667
        %669 = vdwg.mxu0
        %670 = vst [vmem:[#allocation1] sm:$0xff] %v510
        %s671 = scalar_lea.vmem [#allocation1], 1
        %v672 = vld [vmem:[%s671] ss:$4 sm:$0xff]
        %s673 = scalar_lea.vmem [#allocation1], 2
        %v674 = vld [vmem:[%s673] ss:$4 sm:$0xff]
        %s675 = scalar_lea.vmem [#allocation1], 3
        %v676 = vld [vmem:[%s675] ss:$4 sm:$0xff]
        %677 = vst [vmem:[#allocation1 + $0x20] sm:$0xff] %v520
        %s678 = scalar_lea.vmem [#allocation1], 33
        %v679 = vld [vmem:[%s678] ss:$4 sm:$0xff]
        %s680 = scalar_lea.vmem [#allocation1], 34
        %v681 = vld [vmem:[%s680] ss:$4 sm:$0xff]
        %s682 = scalar_lea.vmem [#allocation1], 35
        %v683 = vld [vmem:[%s682] ss:$4 sm:$0xff]
        %684 = vst [vmem:[#allocation1] sm:$0xff] %v511
        %v685 = vld [vmem:[%s671] ss:$4 sm:$0xff]
        %v686 = vld [vmem:[%s673] ss:$4 sm:$0xff]
        %v687 = vld [vmem:[%s675] ss:$4 sm:$0xff]
        %s688 = scalar_lea.vmem [#allocation2], 64
        %v689 = vld [vmem:[%s688] sm:$0xff]
        %v690 = vld [vmem:[%s688 + $0x8] sm:$0xff]
        %v691 = vld [vmem:[%s688 + $0x10] sm:$0xff]
        %v692 = vld [vmem:[%s688 + $0x18] sm:$0xff]
        %693 = vst [vmem:[#allocation1] ss:$9 sm:$0xff] %v672
        %s694 = scalar_lea.vmem [#allocation1], 1
        %695 = vst [vmem:[%s694] ss:$9 sm:$0xff] %v674
        %s696 = scalar_lea.vmem [#allocation1], 2
        %697 = vst [vmem:[%s696] ss:$9 sm:$0xff] %v676
        %s698 = scalar_lea.vmem [#allocation1], 3
        %699 = vst [vmem:[%s698] ss:$9 sm:$0xff] %v679
        %s700 = scalar_lea.vmem [#allocation1], 4
        %701 = vst [vmem:[%s700] ss:$9 sm:$0xff] %v681
        %s702 = scalar_lea.vmem [#allocation1], 5
        %703 = vst [vmem:[%s702] ss:$9 sm:$0xff] %v683
        %s704 = scalar_lea.vmem [#allocation1], 6
        %705 = vst [vmem:[%s704] ss:$9 sm:$0xff] %v685
        %s706 = scalar_lea.vmem [#allocation1], 7
        %707 = vst [vmem:[%s706] ss:$9 sm:$0xff] %v686
        %v708 = vld [vmem:[#allocation1] sm:$0xff]
        %709 = vst [vmem:[#allocation1] ss:$9 sm:$0xff] %v687
        %v710 = vld [vmem:[#allocation1] sm:$0xff]
        %v711 = vsel %vm597, %v708, 0
        %v713 = vsel %vm597, %v710, 0
        %715 = vmatpush.msra.mxu0 0.0
        %716 = vmatpush.msra.mxu0 0.0
        %717 = vmatpush.msra.mxu0 0.0
        %718 = vmatpush.msra.mxu0 0.0
        %719 = vmatpush.msra.mxu0 0.0
        %720 = vmatpush.msra.mxu0 0.0
        %721 = vmatpush.msra.mxu0 0.0
        %722 = vmatpush.msra.mxu0 0.0
        %723 = vmatpush.msra.mxu0 0.0
        %724 = vmatpush.msra.mxu0 0.0
        %725 = vmatpush.msra.mxu0 0.0
        %726 = vmatpush.msra.mxu0 0.0
        %727 = vmatpush.msra.mxu0 %v692
        %728 = vmatpush.msra.mxu0 %v691
        %729 = vmatpush.msra.mxu0 %v690
        %730 = vmatpush.msra.mxu0 %v689
        %731 = vmatmul.f32.gmra.mxu0 %v711
        %v732 = vpop.f32.mrf.mxu0
        %v733 = vadd.f32 0.0, %v732
        %734 = vmatmul.f32.gmra.mxu0 %v713
        %v735 = vpop.f32.mrf.mxu0
        %v736 = vadd.f32 0.0, %v735
        %737 = vdwg.mxu0
        %v738 = vadd.f32 %v665, %v733
        %v739 = vadd.f32 %v668, %v736
        %v740 = vrot.slane %v514, 3
        %v741 = vrot.slane %v528, 3
        %v742 = vrot.slane %v515, 3
        %v743 = vsel %vm465, %v514, %v740
        %v744 = vsel %vm536, %v514, %v740
        %v745 = vrot.slane %v744, 1
        %v746 = vsel %vm539, %v514, %v740
        %v747 = vrot.slane %v746, 2
        %v748 = vsel %vm465, %v528, %v741
        %v749 = vsel %vm536, %v528, %v741
        %v750 = vrot.slane %v749, 1
        %v751 = vsel %vm539, %v528, %v741
        %v752 = vrot.slane %v751, 2
        %v753 = vsel %vm465, %v515, %v742
        %v754 = vsel %vm536, %v515, %v742
        %v755 = vrot.slane %v754, 1
        %v756 = vsel %vm539, %v515, %v742
        %v757 = vrot.slane %v756, 2
        %s758 = scalar_lea.vmem [#allocation2], 96
        %v759 = vld [vmem:[%s758] sm:$0xff]
        %v760 = vld [vmem:[%s758 + $0x8] sm:$0xff]
        %v761 = vld [vmem:[%s758 + $0x10] sm:$0xff]
        %v762 = vld [vmem:[%s758 + $0x18] sm:$0xff]
        %763 = vst [vmem:[#allocation1] ss:$9 sm:$0xff] %v743
        %s764 = scalar_lea.vmem [#allocation1], 1
        %765 = vst [vmem:[%s764] ss:$9 sm:$0xff] %v745
        %s766 = scalar_lea.vmem [#allocation1], 2
        %767 = vst [vmem:[%s766] ss:$9 sm:$0xff] %v747
        %s768 = scalar_lea.vmem [#allocation1], 3
        %769 = vst [vmem:[%s768] ss:$9 sm:$0xff] %v748
        %s770 = scalar_lea.vmem [#allocation1], 4
        %771 = vst [vmem:[%s770] ss:$9 sm:$0xff] %v750
        %s772 = scalar_lea.vmem [#allocation1], 5
        %773 = vst [vmem:[%s772] ss:$9 sm:$0xff] %v752
        %s774 = scalar_lea.vmem [#allocation1], 6
        %775 = vst [vmem:[%s774] ss:$9 sm:$0xff] %v753
        %s776 = scalar_lea.vmem [#allocation1], 7
        %777 = vst [vmem:[%s776] ss:$9 sm:$0xff] %v755
        %v778 = vld [vmem:[#allocation1] sm:$0xff]
        %779 = vst [vmem:[#allocation1] ss:$9 sm:$0xff] %v757
        %v780 = vld [vmem:[#allocation1] sm:$0xff]
        %v781 = vsel %vm597, %v778, 0
        %v783 = vsel %vm597, %v780, 0
        %785 = vmatpush.msra.mxu0 0.0
        %786 = vmatpush.msra.mxu0 0.0
        %787 = vmatpush.msra.mxu0 0.0
        %788 = vmatpush.msra.mxu0 0.0
        %789 = vmatpush.msra.mxu0 0.0
        %790 = vmatpush.msra.mxu0 0.0
        %791 = vmatpush.msra.mxu0 0.0
        %792 = vmatpush.msra.mxu0 0.0
        %793 = vmatpush.msra.mxu0 0.0
        %794 = vmatpush.msra.mxu0 0.0
        %795 = vmatpush.msra.mxu0 0.0
        %796 = vmatpush.msra.mxu0 0.0
        %797 = vmatpush.msra.mxu0 %v762
        %798 = vmatpush.msra.mxu0 %v761
        %799 = vmatpush.msra.mxu0 %v760
        %800 = vmatpush.msra.mxu0 %v759
        %801 = vmatmul.f32.gmra.mxu0 %v781
        %v802 = vpop.f32.mrf.mxu0
        %v803 = vadd.f32 0.0, %v802
        %804 = vmatmul.f32.gmra.mxu0 %v783
        %v805 = vpop.f32.mrf.mxu0
        %v806 = vadd.f32 0.0, %v805
        %807 = vdwg.mxu0
        %v808 = vadd.f32 %v738, %v803
        %v809 = vadd.f32 %v739, %v806
        %v810 = vrot.slane %v516, 3
        %v811 = vrot.slane %v531, 3
        %v812 = vrot.slane %v517, 3
        %v813 = vsel %vm465, %v516, %v810
        %v814 = vsel %vm536, %v516, %v810
        %v815 = vrot.slane %v814, 1
        %v816 = vsel %vm539, %v516, %v810
        %v817 = vrot.slane %v816, 2
        %v818 = vsel %vm465, %v531, %v811
        %v819 = vsel %vm536, %v531, %v811
        %v820 = vrot.slane %v819, 1
        %v821 = vsel %vm539, %v531, %v811
        %v822 = vrot.slane %v821, 2
        %v823 = vsel %vm465, %v517, %v812
        %v824 = vsel %vm536, %v517, %v812
        %v825 = vrot.slane %v824, 1
        %v826 = vsel %vm539, %v517, %v812
        %v827 = vrot.slane %v826, 2
        %s828 = scalar_lea.vmem [#allocation2], 128
        %v829 = vld [vmem:[%s828] sm:$0xff]
        %v830 = vld [vmem:[%s828 + $0x8] sm:$0xff]
        %v831 = vld [vmem:[%s828 + $0x10] sm:$0xff]
        %v832 = vld [vmem:[%s828 + $0x18] sm:$0xff]
        %833 = vst [vmem:[#allocation1] ss:$9 sm:$0xff] %v813
        %s834 = scalar_lea.vmem [#allocation1], 1
        %835 = vst [vmem:[%s834] ss:$9 sm:$0xff] %v815
        %s836 = scalar_lea.vmem [#allocation1], 2
        %837 = vst [vmem:[%s836] ss:$9 sm:$0xff] %v817
        %s838 = scalar_lea.vmem [#allocation1], 3
        %839 = vst [vmem:[%s838] ss:$9 sm:$0xff] %v818
        %s840 = scalar_lea.vmem [#allocation1], 4
        %841 = vst [vmem:[%s840] ss:$9 sm:$0xff] %v820
        %s842 = scalar_lea.vmem [#allocation1], 5
        %843 = vst [vmem:[%s842] ss:$9 sm:$0xff] %v822
        %s844 = scalar_lea.vmem [#allocation1], 6
        %845 = vst [vmem:[%s844] ss:$9 sm:$0xff] %v823
        %s846 = scalar_lea.vmem [#allocation1], 7
        %847 = vst [vmem:[%s846] ss:$9 sm:$0xff] %v825
        %v848 = vld [vmem:[#allocation1] sm:$0xff]
        %849 = vst [vmem:[#allocation1] ss:$9 sm:$0xff] %v827
        %v850 = vld [vmem:[#allocation1] sm:$0xff]
        %v851 = vsel %vm597, %v848, 0
        %v853 = vsel %vm597, %v850, 0
        %855 = vmatpush.msra.mxu0 0.0
        %856 = vmatpush.msra.mxu0 0.0
        %857 = vmatpush.msra.mxu0 0.0
        %858 = vmatpush.msra.mxu0 0.0
        %859 = vmatpush.msra.mxu0 0.0
        %860 = vmatpush.msra.mxu0 0.0
        %861 = vmatpush.msra.mxu0 0.0
        %862 = vmatpush.msra.mxu0 0.0
        %863 = vmatpush.msra.mxu0 0.0
        %864 = vmatpush.msra.mxu0 0.0
        %865 = vmatpush.msra.mxu0 0.0
        %866 = vmatpush.msra.mxu0 0.0
        %867 = vmatpush.msra.mxu0 %v832
        %868 = vmatpush.msra.mxu0 %v831
        %869 = vmatpush.msra.mxu0 %v830
        %870 = vmatpush.msra.mxu0 %v829
        %871 = vmatmul.f32.gmra.mxu0 %v851
        %v872 = vpop.f32.mrf.mxu0
        %v873 = vadd.f32 0.0, %v872
        %874 = vmatmul.f32.gmra.mxu0 %v853
        %v875 = vpop.f32.mrf.mxu0
        %v876 = vadd.f32 0.0, %v875
        %877 = vdwg.mxu0
        %v878 = vadd.f32 %v808, %v873
        %v879 = vadd.f32 %v809, %v876
        %880 = vst [vmem:[#allocation1] sm:$0xff] %v514
        %s881 = scalar_lea.vmem [#allocation1], 1
        %v882 = vld [vmem:[%s881] ss:$4 sm:$0xff]
        %s883 = scalar_lea.vmem [#allocation1], 2
        %v884 = vld [vmem:[%s883] ss:$4 sm:$0xff]
        %s885 = scalar_lea.vmem [#allocation1], 3
        %v886 = vld [vmem:[%s885] ss:$4 sm:$0xff]
        %887 = vst [vmem:[#allocation1 + $0x20] sm:$0xff] %v528
        %s888 = scalar_lea.vmem [#allocation1], 33
        %v889 = vld [vmem:[%s888] ss:$4 sm:$0xff]
        %s890 = scalar_lea.vmem [#allocation1], 34
        %v891 = vld [vmem:[%s890] ss:$4 sm:$0xff]
        %s892 = scalar_lea.vmem [#allocation1], 35
        %v893 = vld [vmem:[%s892] ss:$4 sm:$0xff]
        %894 = vst [vmem:[#allocation1] sm:$0xff] %v515
        %v895 = vld [vmem:[%s881] ss:$4 sm:$0xff]
        %v896 = vld [vmem:[%s883] ss:$4 sm:$0xff]
        %v897 = vld [vmem:[%s885] ss:$4 sm:$0xff]
        %s898 = scalar_lea.vmem [#allocation2], 160
        %v899 = vld [vmem:[%s898] sm:$0xff]
        %v900 = vld [vmem:[%s898 + $0x8] sm:$0xff]
        %v901 = vld [vmem:[%s898 + $0x10] sm:$0xff]
        %v902 = vld [vmem:[%s898 + $0x18] sm:$0xff]
        %903 = vst [vmem:[#allocation1] ss:$9 sm:$0xff] %v882
        %s904 = scalar_lea.vmem [#allocation1], 1
        %905 = vst [vmem:[%s904] ss:$9 sm:$0xff] %v884
        %s906 = scalar_lea.vmem [#allocation1], 2
        %907 = vst [vmem:[%s906] ss:$9 sm:$0xff] %v886
        %s908 = scalar_lea.vmem [#allocation1], 3
        %909 = vst [vmem:[%s908] ss:$9 sm:$0xff] %v889
        %s910 = scalar_lea.vmem [#allocation1], 4
        %911 = vst [vmem:[%s910] ss:$9 sm:$0xff] %v891
        %s912 = scalar_lea.vmem [#allocation1], 5
        %913 = vst [vmem:[%s912] ss:$9 sm:$0xff] %v893
        %s914 = scalar_lea.vmem [#allocation1], 6
        %915 = vst [vmem:[%s914] ss:$9 sm:$0xff] %v895
        %s916 = scalar_lea.vmem [#allocation1], 7
        %917 = vst [vmem:[%s916] ss:$9 sm:$0xff] %v896
        %v918 = vld [vmem:[#allocation1] sm:$0xff]
        %919 = vst [vmem:[#allocation1] ss:$9 sm:$0xff] %v897
        %v920 = vld [vmem:[#allocation1] sm:$0xff]
        %v921 = vsel %vm597, %v918, 0
        %v923 = vsel %vm597, %v920, 0
        %925 = vmatpush.msra.mxu0 0.0
        %926 = vmatpush.msra.mxu0 0.0
        %927 = vmatpush.msra.mxu0 0.0
        %928 = vmatpush.msra.mxu0 0.0
        %929 = vmatpush.msra.mxu0 0.0
        %930 = vmatpush.msra.mxu0 0.0
        %931 = vmatpush.msra.mxu0 0.0
        %932 = vmatpush.msra.mxu0 0.0
        %933 = vmatpush.msra.mxu0 0.0
        %934 = vmatpush.msra.mxu0 0.0
        %935 = vmatpush.msra.mxu0 0.0
        %936 = vmatpush.msra.mxu0 0.0
        %937 = vmatpush.msra.mxu0 %v902
        %938 = vmatpush.msra.mxu0 %v901
        %939 = vmatpush.msra.mxu0 %v900
        %940 = vmatpush.msra.mxu0 %v899
        %941 = vmatmul.f32.gmra.mxu0 %v921
        %v942 = vpop.f32.mrf.mxu0
        %v943 = vadd.f32 0.0, %v942
        %944 = vmatmul.f32.gmra.mxu0 %v923
        %v945 = vpop.f32.mrf.mxu0
        %v946 = vadd.f32 0.0, %v945
        %947 = vdwg.mxu0
        %v948 = vadd.f32 %v878, %v943
        %v949 = vadd.f32 %v879, %v946
        %v950 = vrot.slane %v521, 3
        %v951 = vsel %vm465, %v521, %v950
        %v952 = vsel %vm536, %v521, %v950
        %v953 = vrot.slane %v952, 1
        %v954 = vsel %vm539, %v521, %v950
        %v955 = vrot.slane %v954, 2
        %s956 = scalar_lea.vmem [#allocation2], 192
        %v957 = vld [vmem:[%s956] sm:$0xff]
        %v958 = vld [vmem:[%s956 + $0x8] sm:$0xff]
        %v959 = vld [vmem:[%s956 + $0x10] sm:$0xff]
        %v960 = vld [vmem:[%s956 + $0x18] sm:$0xff]
        %961 = vst [vmem:[#allocation1] ss:$9 sm:$0xff] %v542
        %s962 = scalar_lea.vmem [#allocation1], 1
        %963 = vst [vmem:[%s962] ss:$9 sm:$0xff] %v544
        %s964 = scalar_lea.vmem [#allocation1], 2
        %965 = vst [vmem:[%s964] ss:$9 sm:$0xff] %v546
        %s966 = scalar_lea.vmem [#allocation1], 3
        %967 = vst [vmem:[%s966] ss:$9 sm:$0xff] %v547
        %s968 = scalar_lea.vmem [#allocation1], 4
        %969 = vst [vmem:[%s968] ss:$9 sm:$0xff] %v549
        %s970 = scalar_lea.vmem [#allocation1], 5
        %971 = vst [vmem:[%s970] ss:$9 sm:$0xff] %v551
        %s972 = scalar_lea.vmem [#allocation1], 6
        %973 = vst [vmem:[%s972] ss:$9 sm:$0xff] %v951
        %s974 = scalar_lea.vmem [#allocation1], 7
        %975 = vst [vmem:[%s974] ss:$9 sm:$0xff] %v953
        %v976 = vld [vmem:[#allocation1] sm:$0xff]
        %977 = vst [vmem:[#allocation1] ss:$9 sm:$0xff] %v955
        %v978 = vld [vmem:[#allocation1] sm:$0xff]
        %v979 = vsel %vm597, %v976, 0
        %v981 = vsel %vm597, %v978, 0
        %983 = vmatpush.msra.mxu0 0.0
        %984 = vmatpush.msra.mxu0 0.0
        %985 = vmatpush.msra.mxu0 0.0
        %986 = vmatpush.msra.mxu0 0.0
        %987 = vmatpush.msra.mxu0 0.0
        %988 = vmatpush.msra.mxu0 0.0
        %989 = vmatpush.msra.mxu0 0.0
        %990 = vmatpush.msra.mxu0 0.0
        %991 = vmatpush.msra.mxu0 0.0
        %992 = vmatpush.msra.mxu0 0.0
        %993 = vmatpush.msra.mxu0 0.0
        %994 = vmatpush.msra.mxu0 0.0
        %995 = vmatpush.msra.mxu0 %v960
        %996 = vmatpush.msra.mxu0 %v959
        %997 = vmatpush.msra.mxu0 %v958
        %998 = vmatpush.msra.mxu0 %v957
        %999 = vmatmul.f32.gmra.mxu0 %v979
        %v1000 = vpop.f32.mrf.mxu0
        %v1001 = vadd.f32 0.0, %v1000
        %1002 = vmatmul.f32.gmra.mxu0 %v981
        %v1003 = vpop.f32.mrf.mxu0
        %v1004 = vadd.f32 0.0, %v1003
        %1005 = vdwg.mxu0
        %v1006 = vadd.f32 %v948, %v1001
        %v1007 = vadd.f32 %v949, %v1004
        %v1008 = vrot.slane %v525, 3
        %v1009 = vsel %vm465, %v525, %v1008
        %v1010 = vsel %vm536, %v525, %v1008
        %v1011 = vrot.slane %v1010, 1
        %v1012 = vsel %vm539, %v525, %v1008
        %v1013 = vrot.slane %v1012, 2
        %s1014 = scalar_lea.vmem [#allocation2], 224
        %v1015 = vld [vmem:[%s1014] sm:$0xff]
        %v1016 = vld [vmem:[%s1014 + $0x8] sm:$0xff]
        %v1017 = vld [vmem:[%s1014 + $0x10] sm:$0xff]
        %v1018 = vld [vmem:[%s1014 + $0x18] sm:$0xff]
        %1019 = vst [vmem:[#allocation1] ss:$9 sm:$0xff] %v564
        %s1020 = scalar_lea.vmem [#allocation1], 1
        %1021 = vst [vmem:[%s1020] ss:$9 sm:$0xff] %v566
        %s1022 = scalar_lea.vmem [#allocation1], 2
        %1023 = vst [vmem:[%s1022] ss:$9 sm:$0xff] %v568
        %s1024 = scalar_lea.vmem [#allocation1], 3
        %1025 = vst [vmem:[%s1024] ss:$9 sm:$0xff] %v569
        %s1026 = scalar_lea.vmem [#allocation1], 4
        %1027 = vst [vmem:[%s1026] ss:$9 sm:$0xff] %v571
        %s1028 = scalar_lea.vmem [#allocation1], 5
        %1029 = vst [vmem:[%s1028] ss:$9 sm:$0xff] %v573
        %s1030 = scalar_lea.vmem [#allocation1], 6
        %1031 = vst [vmem:[%s1030] ss:$9 sm:$0xff] %v1009
        %s1032 = scalar_lea.vmem [#allocation1], 7
        %1033 = vst [vmem:[%s1032] ss:$9 sm:$0xff] %v1011
        %v1034 = vld [vmem:[#allocation1] sm:$0xff]
        %1035 = vst [vmem:[#allocation1] ss:$9 sm:$0xff] %v1013
        %v1036 = vld [vmem:[#allocation1] sm:$0xff]
        %v1037 = vsel %vm597, %v1034, 0
        %v1039 = vsel %vm597, %v1036, 0
        %1041 = vmatpush.msra.mxu0 0.0
        %1042 = vmatpush.msra.mxu0 0.0
        %1043 = vmatpush.msra.mxu0 0.0
        %1044 = vmatpush.msra.mxu0 0.0
        %1045 = vmatpush.msra.mxu0 0.0
        %1046 = vmatpush.msra.mxu0 0.0
        %1047 = vmatpush.msra.mxu0 0.0
        %1048 = vmatpush.msra.mxu0 0.0
        %1049 = vmatpush.msra.mxu0 0.0
        %1050 = vmatpush.msra.mxu0 0.0
        %1051 = vmatpush.msra.mxu0 0.0
        %1052 = vmatpush.msra.mxu0 0.0
        %1053 = vmatpush.msra.mxu0 %v1018
        %1054 = vmatpush.msra.mxu0 %v1017
        %1055 = vmatpush.msra.mxu0 %v1016
        %1056 = vmatpush.msra.mxu0 %v1015
        %1057 = vmatmul.f32.gmra.mxu0 %v1037
        %v1058 = vpop.f32.mrf.mxu0
        %v1059 = vadd.f32 0.0, %v1058
        %1060 = vmatmul.f32.gmra.mxu0 %v1039
        %v1061 = vpop.f32.mrf.mxu0
        %v1062 = vadd.f32 0.0, %v1061
        %1063 = vdwg.mxu0
        %v1064 = vadd.f32 %v1006, %v1059
        %v1065 = vadd.f32 %v1007, %v1062
        %1066 = vst [vmem:[#allocation1] sm:$0xff] %v520
        %s1067 = scalar_lea.vmem [#allocation1], 1
        %v1068 = vld [vmem:[%s1067] ss:$4 sm:$0xff]
        %s1069 = scalar_lea.vmem [#allocation1], 2
        %v1070 = vld [vmem:[%s1069] ss:$4 sm:$0xff]
        %s1071 = scalar_lea.vmem [#allocation1], 3
        %v1072 = vld [vmem:[%s1071] ss:$4 sm:$0xff]
        %1073 = vst [vmem:[#allocation1 + $0x20] sm:$0xff] %v511
        %s1074 = scalar_lea.vmem [#allocation1], 33
        %v1075 = vld [vmem:[%s1074] ss:$4 sm:$0xff]
        %s1076 = scalar_lea.vmem [#allocation1], 34
        %v1077 = vld [vmem:[%s1076] ss:$4 sm:$0xff]
        %s1078 = scalar_lea.vmem [#allocation1], 35
        %v1079 = vld [vmem:[%s1078] ss:$4 sm:$0xff]
        %1080 = vst [vmem:[#allocation1] sm:$0xff] %v521
        %v1081 = vld [vmem:[%s1067] ss:$4 sm:$0xff]
        %v1082 = vld [vmem:[%s1069] ss:$4 sm:$0xff]
        %v1083 = vld [vmem:[%s1071] ss:$4 sm:$0xff]
        %s1084 = scalar_lea.vmem [#allocation2], 256
        %v1085 = vld [vmem:[%s1084] sm:$0xff]
        %v1086 = vld [vmem:[%s1084 + $0x8] sm:$0xff]
        %v1087 = vld [vmem:[%s1084 + $0x10] sm:$0xff]
        %v1088 = vld [vmem:[%s1084 + $0x18] sm:$0xff]
        %1089 = vst [vmem:[#allocation1] ss:$9 sm:$0xff] %v1068
        %s1090 = scalar_lea.vmem [#allocation1], 1
        %1091 = vst [vmem:[%s1090] ss:$9 sm:$0xff] %v1070
        %s1092 = scalar_lea.vmem [#allocation1], 2
        %1093 = vst [vmem:[%s1092] ss:$9 sm:$0xff] %v1072
        %s1094 = scalar_lea.vmem [#allocation1], 3
        %1095 = vst [vmem:[%s1094] ss:$9 sm:$0xff] %v1075
        %s1096 = scalar_lea.vmem [#allocation1], 4
        %1097 = vst [vmem:[%s1096] ss:$9 sm:$0xff] %v1077
        %s1098 = scalar_lea.vmem [#allocation1], 5
        %1099 = vst [vmem:[%s1098] ss:$9 sm:$0xff] %v1079
        %s1100 = scalar_lea.vmem [#allocation1], 6
        %1101 = vst [vmem:[%s1100] ss:$9 sm:$0xff] %v1081
        %s1102 = scalar_lea.vmem [#allocation1], 7
        %1103 = vst [vmem:[%s1102] ss:$9 sm:$0xff] %v1082
        %v1104 = vld [vmem:[#allocation1] sm:$0xff]
        %1105 = vst [vmem:[#allocation1] ss:$9 sm:$0xff] %v1083
        %v1106 = vld [vmem:[#allocation1] sm:$0xff]
        %v1107 = vsel %vm597, %v1104, 0
        %v1109 = vsel %vm597, %v1106, 0
        %1111 = vmatpush.msra.mxu0 0.0
        %1112 = vmatpush.msra.mxu0 0.0
        %1113 = vmatpush.msra.mxu0 0.0
        %1114 = vmatpush.msra.mxu0 0.0
        %1115 = vmatpush.msra.mxu0 0.0
        %1116 = vmatpush.msra.mxu0 0.0
        %1117 = vmatpush.msra.mxu0 0.0
        %1118 = vmatpush.msra.mxu0 0.0
        %1119 = vmatpush.msra.mxu0 0.0
        %1120 = vmatpush.msra.mxu0 0.0
        %1121 = vmatpush.msra.mxu0 0.0
        %1122 = vmatpush.msra.mxu0 0.0
        %1123 = vmatpush.msra.mxu0 %v1088
        %1124 = vmatpush.msra.mxu0 %v1087
        %1125 = vmatpush.msra.mxu0 %v1086
        %1126 = vmatpush.msra.mxu0 %v1085
        %1127 = vmatmul.f32.gmra.mxu0 %v1107
        %v1128 = vpop.f32.mrf.mxu0
        %v1129 = vadd.f32 0.0, %v1128
        %1130 = vmatmul.f32.gmra.mxu0 %v1109
        %v1131 = vpop.f32.mrf.mxu0
        %v1132 = vadd.f32 0.0, %v1131
        %1133 = vdwg.mxu0
        %v1134 = vadd.f32 %v1064, %v1129
        %v1135 = vadd.f32 %v1065, %v1132
        %v1136 = vld [vmem:[%s4] sm:$0x1]
        %v1138 = vperm.slane %v1136, 0
        %v1140 = vadd.f32 %v1134, %v1138
        %v1141 = vadd.f32 %v1135, %v1138
        %v1142 = vmax.f32 %v1140, 0.0
        %v1143 = vmax.f32 %v1141, 0.0
        %v1146 = vrot.slane %v1142, 1
        %v1147 = vrot.slane %v1142, 2
        %v1148 = vrot.slane %v1142, 3
        %v1149 = vrot.slane %v1142, 4
        %v1150 = vrot.slane %v1142, 5
        %v1151 = vrot.slane %v1142, 6
        %v1152 = vrot.slane %v1142, 7
        %v1153 = vld [vmem:[%s5] sm:$0xff]
        %v1154 = vld [vmem:[%s5 + $0x8] sm:$0xff]
        %v1155 = vld [vmem:[%s5 + $0x10] sm:$0xff]
        %v1156 = vld [vmem:[%s5 + $0x18] sm:$0xff]
        %v1157 = vld [vmem:[%s5 + $0x20] sm:$0xff]
        %v1158 = vld [vmem:[%s5 + $0x28] sm:$0xff]
        %v1159 = vld [vmem:[%s5 + $0x30] sm:$0xff]
        %v1160 = vld [vmem:[%s5 + $0x38] sm:$0xff]
        %1161 = vst [vmem:[#allocation1] ss:$9 sm:$0xff] %v1146
        %s1162 = scalar_lea.vmem [#allocation1], 1
        %1163 = vst [vmem:[%s1162] ss:$9 sm:$0xff] %v1149
        %s1164 = scalar_lea.vmem [#allocation1], 2
        %1165 = vst [vmem:[%s1164] ss:$9 sm:$0xff] %v1152
        %v1166 = vld [vmem:[#allocation1] sm:$0xff]
        %v1167 = vsel %vm597, %v1166, 0
        %1169 = vmatpush.msra.mxu0 0.0
        %1170 = vmatpush.msra.mxu0 0.0
        %1171 = vmatpush.msra.mxu0 0.0
        %1172 = vmatpush.msra.mxu0 0.0
        %1173 = vmatpush.msra.mxu0 0.0
        %1174 = vmatpush.msra.mxu0 0.0
        %1175 = vmatpush.msra.mxu0 0.0
        %1176 = vmatpush.msra.mxu0 0.0
        %1177 = vmatpush.msra.mxu0 0.0
        %1178 = vmatpush.msra.mxu0 0.0
        %1179 = vmatpush.msra.mxu0 0.0
        %1180 = vmatpush.msra.mxu0 0.0
        %1181 = vmatpush.msra.mxu0 %v1160
        %1182 = vmatpush.msra.mxu0 %v1159
        %1183 = vmatpush.msra.mxu0 %v1158
        %1184 = vmatpush.msra.mxu0 %v1157
        %1185 = vmatmul.f32.gmra.mxu0 %v1167
        %v1186 = vpop.f32.mrf.mxu0
        %v1187 = vadd.f32 0.0, %v1186
        %1188 = vdwg.mxu0
        %1189 = vst [vmem:[#allocation1] ss:$9 sm:$0xff] %v1142
        %s1190 = scalar_lea.vmem [#allocation1], 1
        %1191 = vst [vmem:[%s1190] ss:$9 sm:$0xff] %v1148
        %s1192 = scalar_lea.vmem [#allocation1], 2
        %1193 = vst [vmem:[%s1192] ss:$9 sm:$0xff] %v1151
        %v1194 = vld [vmem:[#allocation1] sm:$0xff]
        %v1195 = vsel %vm597, %v1194, 0
        %1197 = vmatpush.msra.mxu0 0.0
        %1198 = vmatpush.msra.mxu0 0.0
        %1199 = vmatpush.msra.mxu0 0.0
        %1200 = vmatpush.msra.mxu0 0.0
        %1201 = vmatpush.msra.mxu0 0.0
        %1202 = vmatpush.msra.mxu0 0.0
        %1203 = vmatpush.msra.mxu0 0.0
        %1204 = vmatpush.msra.mxu0 0.0
        %1205 = vmatpush.msra.mxu0 0.0
        %1206 = vmatpush.msra.mxu0 0.0
        %1207 = vmatpush.msra.mxu0 0.0
        %1208 = vmatpush.msra.mxu0 0.0
        %1209 = vmatpush.msra.mxu0 %v1156
        %1210 = vmatpush.msra.mxu0 %v1155
        %1211 = vmatpush.msra.mxu0 %v1154
        %1212 = vmatpush.msra.mxu0 %v1153
        %1213 = vmatmul.f32.gmra.mxu0 %v1195
        %v1214 = vpop.f32.mrf.mxu0
        %v1215 = vadd.f32 %v1187, %v1214
        %1216 = vdwg.mxu0
        %v1217 = vld [vmem:[%s5 + $0x40] sm:$0xff]
        %v1218 = vld [vmem:[%s5 + $0x48] sm:$0xff]
        %v1219 = vld [vmem:[%s5 + $0x50] sm:$0xff]
        %v1220 = vld [vmem:[%s5 + $0x58] sm:$0xff]
        %1221 = vst [vmem:[#allocation1] ss:$9 sm:$0xff] %v1147
        %s1222 = scalar_lea.vmem [#allocation1], 1
        %1223 = vst [vmem:[%s1222] ss:$9 sm:$0xff] %v1150
        %s1224 = scalar_lea.vmem [#allocation1], 2
        %1225 = vst [vmem:[%s1224] ss:$9 sm:$0xff] %v1143
        %v1226 = vld [vmem:[#allocation1] sm:$0xff]
        %v1227 = vsel %vm597, %v1226, 0
        %1229 = vmatpush.msra.mxu0 0.0
        %1230 = vmatpush.msra.mxu0 0.0
        %1231 = vmatpush.msra.mxu0 0.0
        %1232 = vmatpush.msra.mxu0 0.0
        %1233 = vmatpush.msra.mxu0 0.0
        %1234 = vmatpush.msra.mxu0 0.0
        %1235 = vmatpush.msra.mxu0 0.0
        %1236 = vmatpush.msra.mxu0 0.0
        %1237 = vmatpush.msra.mxu0 0.0
        %1238 = vmatpush.msra.mxu0 0.0
        %1239 = vmatpush.msra.mxu0 0.0
        %1240 = vmatpush.msra.mxu0 0.0
        %1241 = vmatpush.msra.mxu0 %v1220
        %1242 = vmatpush.msra.mxu0 %v1219
        %1243 = vmatpush.msra.mxu0 %v1218
        %1244 = vmatpush.msra.mxu0 %v1217
        %1245 = vmatmul.f32.gmra.mxu0 %v1227
        %v1246 = vpop.f32.mrf.mxu0
        %v1247 = vadd.f32 0.0, %v1246
        %1248 = vdwg.mxu0
        %v1249 = vadd.f32 %v1215, %v1247
        %v1250 = vld [vmem:[%s6] sm:$0x1]
        %v1252 = vperm.slane %v1250, 0
        %v1254 = vadd.f32 %v1249, %v1252
        %v1255 = vmul.f32 %v1254, 5.656854
        %v1256 = vld [vmem:[%s418] sm:$0x7]
        %v1257 = vadd.f32 %v1255, %v1256
        %vm1258 = vcmask 256000
        %v1259 = vsel %vm1258, %v1257, 0.0
        %1260 = vadd.xlane.f32.xlu0 %v1259
        %v1261 = vpop.xlane.xlu0 %1260
        %v1262 = vrcp.pop 32.0
        %v1263 = vmul.f32 32.0, %v1262
        %v1264 = vsub.f32 1.0, %v1263
        %v1265 = vmul.f32 %v1262, %v1264
        %v1266 = vadd.f32 %v1262, %v1265
        %vm1267 = vweird.f32 %v1262
        %v1268 = vsel %vm1267, %v1262, %v1266
        %v1269 = vmul.f32 %v1261, %v1268
        %v1270 = vsub.f32 %v1257, %v1269
        %v1271 = vmul.f32 %v1270, %v1270
        %v1272 = vsel %vm1258, %v1271, 0.0
        %1273 = vadd.xlane.f32.xlu0 %v1272
        %v1274 = vpop.xlane.xlu0 %1273
        %v1275 = vmul.f32 %v1274, %v1268
        %v1276 = vadd.f32 %v1275, 1e-05
        %v1277 = vrsqrt.pop %v1276
        %v1278 = vmul.f32 %v1277, %v1276
        %v1279 = vmul.f32 %v1278, %v1277
        %v1280 = vmul.f32 0.5, %v1279
        %v1281 = vsub.f32 1.5, %v1280
        %v1282 = vmul.f32 %v1277, %v1281
        %vm1283 = vweird.f32 %v1276
        %vm1284 = vweird.f32 %v1277
        %vm1285 = vmor %vm1283, %vm1284
        %v1286 = vsel %vm1285, %v1277, %v1282
        %v1287 = vmul.f32 %v1270, %v1286
        %v1288 = vld [vmem:[%s8] sm:$0x1]
        %v1290 = vperm.slane %v1288, 0
        %v1292 = vmul.f32 %v1287, %v1290
        %v1293 = vld [vmem:[%s9] sm:$0x1]
        %v1295 = vperm.slane %v1293, 0
        %v1297 = vadd.f32 %v1292, %v1295
        %1298 = vst.msk [vmem:[%s425] sm:$0x7] %vm1258, %v1297
        %p1299 = scmp.lt.s32.totalorder %s26, 1
        %s1300 = scalar_select %p1299, %s26, 1
        %p1301 = scmp.lt.s32.totalorder %s27, 0
        %s1302 = scalar_select %p1301, %s27, 0
        %s1303 = sadd.s32 %s1302, %s1300
        %s1304 = smul.addr %s1303, 4
        %s1305 = scalar_lea.vmem %s10, %s1304
        // Predicated region
        $region65: #{tpu_custom_call.1} parent=59 // pred_check
          %p1306 = pneg %p276
        $region66: #{tpu_custom_call.1} parent=59 // pred_check_branch
          %1308 = sbr.rel (%p1306) target = $region68
        $region67: #{tpu_custom_call.1} parent=59 // pred_region
          _
        $region68: #{tpu_custom_call.1} parent=59 // pred_fallthru
          _
      $region60: #{tpu_custom_call.1} parent=5 // pred_fallthru
        _
      %p1309 = scmp.le.s32.totalorder 2, %s17
      // Predicated region
      $region69: #{tpu_custom_call.1} parent=5 // pred_check
        %p1310 = pneg %p1309
      $region70: #{tpu_custom_call.1} parent=5 // pred_check_branch
        %1312 = sbr.rel (%p1310) target = $region72
      $region71: #{tpu_custom_call.1} parent=5 // pred_region
        %s1313 = ssub.s32 %s17, 2
        // Predicated region
        $region73: #{tpu_custom_call.1} parent=71 // pred_check
          %p1314 = pneg %p282
        $region74: #{tpu_custom_call.1} parent=71 // pred_check_branch
          %1316 = sbr.rel (%p1314) target = $region76
        $region75: #{tpu_custom_call.1} parent=71 // pred_region
          %p1317 = scmp.lt.s32.totalorder %s28, 1
          %s1318 = scalar_select %p1317, %s28, 1
          %p1319 = scmp.lt.s32.totalorder %s29, 0
          %s1320 = scalar_select %p1319, %s29, 0
          %s1321 = sadd.s32 %s1320, %s1318
          %s1322 = smul.addr %s1321, 4
          %s1323 = scalar_lea.vmem %s10, %s1322
        $region76: #{tpu_custom_call.1} parent=71 // pred_fallthru
          _
      $region72: #{tpu_custom_call.1} parent=5 // pred_fallthru
        _
    $region6: #{tpu_custom_call.1} parent=1 // loop_footer
      %s21 = sadd.s32 1, %s17
    $region7: #{tpu_custom_call.1} parent=1 // loop_footer_branch
      %16 = sbr.rel target = $region3
    $region8: #{tpu_custom_call.1} parent=1 // loop_exit
      _
    %1324 = vsyncpa [#allocation3], 1
    %s1325 = scalar_lea.sflag [#allocation3], 1
    %1326 = vsyncpa %s1325, 1

</llo_original>
